<compile_context>
chip_gen: v7x
topology: tpu7x:2x2x1
jax: 0.10.0
libtpu: 0.0.40
codegen_flags: <defaults>
</compile_context>

<pallas_src>
import functools

import jax
import jax.numpy as jnp
from jax import lax
from jax.experimental import pallas as pl
from jax.experimental.pallas import tpu as pltpu


def _cdiv(a, b):
    return -(-a // b)


def _round_up(x, m):
    return _cdiv(x, m) * m


def _dual_group_conv_kernel(x_ref, w_ref, b_ref, o_ref, acc_ref, *,
                            Wp, Lout_pad, stride, Cin, Cout, Nb):
    # x_ref  : (Nb, stride*Cin, Lp_pad//stride) f32  phase-split padded input
    # w_ref  : (5, 3*Cout, 5*Cin)               f32  kh-chunked im2col weights
    # b_ref  : (3*Cout, 1)                      f32  combined bias
    # o_ref  : (Nb, Cout, Lout_pad)             f32  flat (Ho, Wp) output grid
    # acc_ref: (3*Cout, Lout_pad)               f32  VMEM scratch accumulator
    for nb in range(Nb):                         # short static batch loop
        xf = x_ref[nb]                           # (stride*Cin, Lps), few vregs
        for kh in range(5):                      # K-chunked accumulation
            pieces = []
            for kw in range(5):
                off = kh * Wp + kw               # static flat tap offset
                p, q = off % stride, off // stride
                # contiguous lane slice of phase p (no strided gathers)
                pieces.append(xf[p * Cin:(p + 1) * Cin, q:q + Lout_pad])
            colk = jnp.concatenate(pieces, axis=0)          # (5*Cin, Lout_pad)
            upd = jnp.dot(w_ref[kh], colk,
                          preferred_element_type=jnp.float32)
            if kh == 0:
                acc_ref[...] = upd
            else:
                acc_ref[...] = acc_ref[...] + upd
        # Epilogue in f32: bias + per-branch ReLU, then branch sum.  The store
        # is a lane-dense, full-vreg stream (Lout_pad is a 128-multiple).
        acc = jnp.maximum(acc_ref[...] + b_ref[...], 0.0)
        o_ref[nb] = (acc[:Cout] + acc[Cout:2 * Cout]
                     + acc[2 * Cout:3 * Cout]).astype(o_ref.dtype)


def _dense_embed_5x5(w, groups, in_channels, out_channels):
    """Grouped torch-layout weight (Cout, Cin//g, k, k) -> dense
    (Cout, Cin, 5, 5) with the kxk kernel centered in the 5x5 frame and the
    group structure encoded as block-diagonal zeros."""
    k = w.shape[-1]
    off = (5 - k) // 2
    cout_pg = out_channels // groups
    cin_pg = in_channels // groups
    dense = jnp.zeros((out_channels, in_channels, 5, 5), jnp.float32)
    for g in range(groups):
        dense = dense.at[g * cout_pg:(g + 1) * cout_pg,
                         g * cin_pg:(g + 1) * cin_pg,
                         off:off + k, off:off + k].set(
                             w[g * cout_pg:(g + 1) * cout_pg])
    return dense


def dual_group_conv(x_nchw, params, groups, stride=1):
    """Forward pass of DualGroupConv. x_nchw: (N, Cin, H, W) float32."""
    w1, b1, w2, b2, w3, b3 = params
    N, Cin, H, W = x_nchw.shape
    Cout = w1.shape[0]
    s = int(stride)

    Ho = (H - 1) // s + 1
    Wo = (W - 1) // s + 1
    Wp = W + 4                              # padded row width (pad=2 per side)
    Lout = Ho * Wp                          # flat output length (Wp cols/row)
    Lout_pad = _round_up(Lout, 128)         # lane-dense output width
    max_off = 4 * Wp + 4                    # largest tap offset (kh=4, kw=4)
    Lp_real = (H + 4) * Wp                  # rows actually holding data
    Lp_pad = _round_up(max(max_off + s * Lout_pad, Lp_real), 128 * s)
    Lps = Lp_pad // s                       # per-phase plane length (128-mult)

    # Batch blocking: G "parallel" grid steps (<= 2 here -> feeds both v7x
    # TensorCores), each step handling Nb elements in a static in-kernel loop.
    Nb = min(_cdiv(N, 2), 8)
    G = _cdiv(N, Nb)
    N_pad = G * Nb

    # Host-side prep (cheap, fusable XLA ops): zero-pad spatially, flatten
    # rows onto one lane axis, pad to a 128*s multiple, split stride phases.
    x_pad = jnp.pad(x_nchw.astype(jnp.float32),
                    ((0, N_pad - N), (0, 0), (2, 2), (2, 2)))
    x_flat = x_pad.reshape(N_pad, Cin, Lp_real)
    x_flat = jnp.pad(x_flat, ((0, 0), (0, 0), (0, Lp_pad - Lp_real)))
    x_slab = (x_flat.reshape(N_pad, Cin, Lps, s)      # [n, ci, q, p]
              .transpose(0, 3, 1, 2)                  # [n, p, ci, q]
              .reshape(N_pad, s * Cin, Lps))          # row index = p*Cin + ci

    # kh-chunked combined im2col weights: (5, 3*Cout, 5*Cin), cols = (kw, ci).
    d1 = _dense_embed_5x5(w1, groups, Cin, Cout)           # 3x3, centered
    d2 = _dense_embed_5x5(w2, groups // 2, Cin, Cout)      # 1x1, centered
    d3 = _dense_embed_5x5(w3, groups, Cin, Cout)           # 5x5
    w_all = jnp.concatenate([d1, d2, d3], axis=0)          # (3*Cout, Cin, 5, 5)
    w_chunks = jnp.transpose(w_all, (2, 0, 3, 1)).reshape(5, 3 * Cout, 5 * Cin)
    w_chunks = w_chunks.astype(jnp.float32)
    b_all = jnp.concatenate([b1, b2, b3]).reshape(3 * Cout, 1)
    b_all = b_all.astype(jnp.float32)

    kernel = functools.partial(_dual_group_conv_kernel, Wp=Wp,
                               Lout_pad=Lout_pad, stride=s, Cin=Cin,
                               Cout=Cout, Nb=Nb)

    out_flat = pl.pallas_call(
        kernel,
        out_shape=jax.ShapeDtypeStruct((N_pad, Cout, Lout_pad), jnp.float32),
        grid_spec=pltpu.PrefetchScalarGridSpec(
            num_scalar_prefetch=0,
            grid=(G,),
            in_specs=[
                pl.BlockSpec((Nb, s * Cin, Lps), lambda g: (g, 0, 0)),
                pl.BlockSpec((5, 3 * Cout, 5 * Cin), lambda g: (0, 0, 0)),
                pl.BlockSpec((3 * Cout, 1), lambda g: (0, 0)),
            ],
            out_specs=pl.BlockSpec((Nb, Cout, Lout_pad), lambda g: (g, 0, 0)),
            scratch_shapes=[pltpu.VMEM((3 * Cout, Lout_pad), jnp.float32)],
        ),
        compiler_params=pltpu.CompilerParams(
            dimension_semantics=("parallel",)),
    )(x_slab, w_chunks, b_all)

    # NCHW view for this harness only (drop the Lout_pad tail and the 4 pad
    # columns per row); a fused downstream consumer would use out_flat as-is.
    out = out_flat[:N, :, :Lout].reshape(N, Cout, Ho, Wp)[:, :, :, :Wo]
    return out


def _reference(x_nchw, params, groups, stride=1):
    """Pure-JAX reference using lax.conv_general_dilated (matches PyTorch)."""
    w1, b1, w2, b2, w3, b3 = params
    dn = ("NCHW", "OIHW", "NCHW")

    def conv(w, b, pad, g):
        y = lax.conv_general_dilated(
            x_nchw, w, window_strides=(stride, stride),
            padding=[(pad, pad), (pad, pad)], dimension_numbers=dn,
            feature_group_count=g)
        return jnp.maximum(y + b[None, :, None, None], 0.0)

    return (conv(w1, b1, 1, groups) + conv(w2, b2, 0, groups // 2)
            + conv(w3, b3, 2, groups))


def init_params(key, in_channels, out_channels, kernel_size, groups):
    assert out_channels % groups == 0 and groups % 2 == 0
    ks = jax.random.split(key, 6)
    shapes = [
        (out_channels, in_channels // groups, kernel_size, kernel_size),
        (out_channels,),
        (out_channels, in_channels // (groups // 2), 1, 1),
        (out_channels,),
        (out_channels, in_channels // groups, 5, 5),
        (out_channels,),
    ]
    return tuple(0.1 * jax.random.normal(k, s, jnp.float32)
                 for k, s in zip(ks, shapes))


if __name__ == "__main__":
    # Small shapes consistent with the module.
    N, Cin, H, W = 2, 4, 16, 16
    Cout, groups, kernel_size, stride = 8, 2, 3, 1

    key = jax.random.PRNGKey(0)
    kx, kp = jax.random.split(key)
    x = jax.random.normal(kx, (N, Cin, H, W), jnp.float32)
    params = init_params(kp, Cin, Cout, kernel_size, groups)

    out = jax.block_until_ready(dual_group_conv(x, params, groups, stride))
    ref = jax.block_until_ready(_reference(x, params, groups, stride))

    assert out.shape == ref.shape, (out.shape, ref.shape)
    max_err = float(jnp.max(jnp.abs(out - ref)))
    # f32 operands throughout; tolerance only covers MXU pass / summation
    # order differences vs the XLA conv reference.
    assert jnp.allclose(out, ref, rtol=2e-2, atol=2e-2), max_err

    print("KERNEL_OK")
</pallas_src>

<mosaic_0001>
module attributes {stable_mosaic.version = 11 : i64} {
  func.func @_dual_group_conv_kernel(%arg0: i32, %arg1: memref<1x4x512xf32, #tpu.memory_space<vmem>>, %arg2: memref<5x24x20xf32, #tpu.memory_space<vmem>>, %arg3: memref<24x1xf32, #tpu.memory_space<vmem>>, %arg4: memref<1x8x384xf32, #tpu.memory_space<vmem>>, %arg5: memref<24x384xf32, #tpu.memory_space<vmem>>) attributes {dimension_semantics = [#tpu.dimension_semantics<parallel>], iteration_bounds = array<i64: 2>, scalar_prefetch = 0 : i64, scratch_operands = 1 : i64, tpu.core_type = #tpu.core_type<tc>, window_params = [{transform_indices = @transform_0, window_bounds = array<i64: 1, 4, 512>}, {pipeline_mode = #tpu.pipeline_mode<synchronous>, transform_indices = @transform_1, window_bounds = array<i64: 5, 24, 20>}, {pipeline_mode = #tpu.pipeline_mode<synchronous>, transform_indices = @transform_2, window_bounds = array<i64: 24, 1>}, {transform_indices = @transform_3, window_bounds = array<i64: 1, 8, 384>}]} {
    %c0 = arith.constant 0 : index
    %c0_0 = arith.constant 0 : index
    %c0_1 = arith.constant 0 : index
    %0 = vector.load %arg1[%c0, %c0_0, %c0_1] : memref<1x4x512xf32, #tpu.memory_space<vmem>>, vector<1x4x512xf32>
    %1 = vector.shape_cast %0 : vector<1x4x512xf32> to vector<4x512xf32>
    %2 = vector.extract_strided_slice %1 {offsets = [0, 0], sizes = [4, 384], strides = [1, 1]} : vector<4x512xf32> to vector<4x384xf32>
    %3 = vector.extract_strided_slice %1 {offsets = [0, 1], sizes = [4, 384], strides = [1, 1]} : vector<4x512xf32> to vector<4x384xf32>
    %4 = vector.extract_strided_slice %1 {offsets = [0, 2], sizes = [4, 384], strides = [1, 1]} : vector<4x512xf32> to vector<4x384xf32>
    %5 = vector.extract_strided_slice %1 {offsets = [0, 3], sizes = [4, 384], strides = [1, 1]} : vector<4x512xf32> to vector<4x384xf32>
    %6 = vector.extract_strided_slice %1 {offsets = [0, 4], sizes = [4, 384], strides = [1, 1]} : vector<4x512xf32> to vector<4x384xf32>
    %7 = tpu.concatenate %2, %3, %4, %5, %6 in 0 : vector<4x384xf32>, vector<4x384xf32>, vector<4x384xf32>, vector<4x384xf32>, vector<4x384xf32> -> vector<20x384xf32>
    %c0_2 = arith.constant 0 : index
    %c0_3 = arith.constant 0 : index
    %c0_4 = arith.constant 0 : index
    %8 = vector.load %arg2[%c0_2, %c0_3, %c0_4] : memref<5x24x20xf32, #tpu.memory_space<vmem>>, vector<1x24x20xf32>
    %9 = vector.shape_cast %8 : vector<1x24x20xf32> to vector<24x20xf32>
    %cst = arith.constant dense<0.000000e+00> : vector<24x384xf32>
    %10 = tpu.matmul %9, %7, %cst {dimension_numbers = #tpu.dot_dimension_numbers<[1], [0], [0], [1], [0, 0, 1, 1], [], []>} : vector<24x20xf32>, vector<20x384xf32>, vector<24x384xf32> -> vector<24x384xf32>
    %c0_5 = arith.constant 0 : index
    %c0_6 = arith.constant 0 : index
    %11 = vector.load %arg5[%c0_5, %c0_6] : memref<24x384xf32, #tpu.memory_space<vmem>>, vector<24x384xf32>
    tpu.vector_store %arg5[%c0_5, %c0_6], %10 {strides = array<i32>} : memref<24x384xf32, #tpu.memory_space<vmem>>, vector<24x384xf32>,
    %12 = vector.extract_strided_slice %1 {offsets = [0, 20], sizes = [4, 384], strides = [1, 1]} : vector<4x512xf32> to vector<4x384xf32>
    %13 = vector.extract_strided_slice %1 {offsets = [0, 21], sizes = [4, 384], strides = [1, 1]} : vector<4x512xf32> to vector<4x384xf32>
    %14 = vector.extract_strided_slice %1 {offsets = [0, 22], sizes = [4, 384], strides = [1, 1]} : vector<4x512xf32> to vector<4x384xf32>
    %15 = vector.extract_strided_slice %1 {offsets = [0, 23], sizes = [4, 384], strides = [1, 1]} : vector<4x512xf32> to vector<4x384xf32>
    %16 = vector.extract_strided_slice %1 {offsets = [0, 24], sizes = [4, 384], strides = [1, 1]} : vector<4x512xf32> to vector<4x384xf32>
    %17 = tpu.concatenate %12, %13, %14, %15, %16 in 0 : vector<4x384xf32>, vector<4x384xf32>, vector<4x384xf32>, vector<4x384xf32>, vector<4x384xf32> -> vector<20x384xf32>
    %c1 = arith.constant 1 : index
    %c0_7 = arith.constant 0 : index
    %c0_8 = arith.constant 0 : index
    %18 = vector.load %arg2[%c1, %c0_7, %c0_8] : memref<5x24x20xf32, #tpu.memory_space<vmem>>, vector<1x24x20xf32>
    %19 = vector.shape_cast %18 : vector<1x24x20xf32> to vector<24x20xf32>
    %cst_9 = arith.constant dense<0.000000e+00> : vector<24x384xf32>
    %20 = tpu.matmul %19, %17, %cst_9 {dimension_numbers = #tpu.dot_dimension_numbers<[1], [0], [0], [1], [0, 0, 1, 1], [], []>} : vector<24x20xf32>, vector<20x384xf32>, vector<24x384xf32> -> vector<24x384xf32>
    %c0_10 = arith.constant 0 : index
    %c0_11 = arith.constant 0 : index
    %21 = vector.load %arg5[%c0_10, %c0_11] : memref<24x384xf32, #tpu.memory_space<vmem>>, vector<24x384xf32>
    %22 = arith.addf %21, %20 : vector<24x384xf32>
    %c0_12 = arith.constant 0 : index
    %c0_13 = arith.constant 0 : index
    %23 = vector.load %arg5[%c0_12, %c0_13] : memref<24x384xf32, #tpu.memory_space<vmem>>, vector<24x384xf32>
    tpu.vector_store %arg5[%c0_12, %c0_13], %22 {strides = array<i32>} : memref<24x384xf32, #tpu.memory_space<vmem>>, vector<24x384xf32>,
    %24 = vector.extract_strided_slice %1 {offsets = [0, 40], sizes = [4, 384], strides = [1, 1]} : vector<4x512xf32> to vector<4x384xf32>
    %25 = vector.extract_strided_slice %1 {offsets = [0, 41], sizes = [4, 384], strides = [1, 1]} : vector<4x512xf32> to vector<4x384xf32>
    %26 = vector.extract_strided_slice %1 {offsets = [0, 42], sizes = [4, 384], strides = [1, 1]} : vector<4x512xf32> to vector<4x384xf32>
    %27 = vector.extract_strided_slice %1 {offsets = [0, 43], sizes = [4, 384], strides = [1, 1]} : vector<4x512xf32> to vector<4x384xf32>
    %28 = vector.extract_strided_slice %1 {offsets = [0, 44], sizes = [4, 384], strides = [1, 1]} : vector<4x512xf32> to vector<4x384xf32>
    %29 = tpu.concatenate %24, %25, %26, %27, %28 in 0 : vector<4x384xf32>, vector<4x384xf32>, vector<4x384xf32>, vector<4x384xf32>, vector<4x384xf32> -> vector<20x384xf32>
    %c2 = arith.constant 2 : index
    %c0_14 = arith.constant 0 : index
    %c0_15 = arith.constant 0 : index
    %30 = vector.load %arg2[%c2, %c0_14, %c0_15] : memref<5x24x20xf32, #tpu.memory_space<vmem>>, vector<1x24x20xf32>
    %31 = vector.shape_cast %30 : vector<1x24x20xf32> to vector<24x20xf32>
    %cst_16 = arith.constant dense<0.000000e+00> : vector<24x384xf32>
    %32 = tpu.matmul %31, %29, %cst_16 {dimension_numbers = #tpu.dot_dimension_numbers<[1], [0], [0], [1], [0, 0, 1, 1], [], []>} : vector<24x20xf32>, vector<20x384xf32>, vector<24x384xf32> -> vector<24x384xf32>
    %c0_17 = arith.constant 0 : index
    %c0_18 = arith.constant 0 : index
    %33 = vector.load %arg5[%c0_17, %c0_18] : memref<24x384xf32, #tpu.memory_space<vmem>>, vector<24x384xf32>
    %34 = arith.addf %33, %32 : vector<24x384xf32>
    %c0_19 = arith.constant 0 : index
    %c0_20 = arith.constant 0 : index
    %35 = vector.load %arg5[%c0_19, %c0_20] : memref<24x384xf32, #tpu.memory_space<vmem>>, vector<24x384xf32>
    tpu.vector_store %arg5[%c0_19, %c0_20], %34 {strides = array<i32>} : memref<24x384xf32, #tpu.memory_space<vmem>>, vector<24x384xf32>,
    %36 = vector.extract_strided_slice %1 {offsets = [0, 60], sizes = [4, 384], strides = [1, 1]} : vector<4x512xf32> to vector<4x384xf32>
    %37 = vector.extract_strided_slice %1 {offsets = [0, 61], sizes = [4, 384], strides = [1, 1]} : vector<4x512xf32> to vector<4x384xf32>
    %38 = vector.extract_strided_slice %1 {offsets = [0, 62], sizes = [4, 384], strides = [1, 1]} : vector<4x512xf32> to vector<4x384xf32>
    %39 = vector.extract_strided_slice %1 {offsets = [0, 63], sizes = [4, 384], strides = [1, 1]} : vector<4x512xf32> to vector<4x384xf32>
    %40 = vector.extract_strided_slice %1 {offsets = [0, 64], sizes = [4, 384], strides = [1, 1]} : vector<4x512xf32> to vector<4x384xf32>
    %41 = tpu.concatenate %36, %37, %38, %39, %40 in 0 : vector<4x384xf32>, vector<4x384xf32>, vector<4x384xf32>, vector<4x384xf32>, vector<4x384xf32> -> vector<20x384xf32>
    %c3 = arith.constant 3 : index
    %c0_21 = arith.constant 0 : index
    %c0_22 = arith.constant 0 : index
    %42 = vector.load %arg2[%c3, %c0_21, %c0_22] : memref<5x24x20xf32, #tpu.memory_space<vmem>>, vector<1x24x20xf32>
    %43 = vector.shape_cast %42 : vector<1x24x20xf32> to vector<24x20xf32>
    %cst_23 = arith.constant dense<0.000000e+00> : vector<24x384xf32>
    %44 = tpu.matmul %43, %41, %cst_23 {dimension_numbers = #tpu.dot_dimension_numbers<[1], [0], [0], [1], [0, 0, 1, 1], [], []>} : vector<24x20xf32>, vector<20x384xf32>, vector<24x384xf32> -> vector<24x384xf32>
    %c0_24 = arith.constant 0 : index
    %c0_25 = arith.constant 0 : index
    %45 = vector.load %arg5[%c0_24, %c0_25] : memref<24x384xf32, #tpu.memory_space<vmem>>, vector<24x384xf32>
    %46 = arith.addf %45, %44 : vector<24x384xf32>
    %c0_26 = arith.constant 0 : index
    %c0_27 = arith.constant 0 : index
    %47 = vector.load %arg5[%c0_26, %c0_27] : memref<24x384xf32, #tpu.memory_space<vmem>>, vector<24x384xf32>
    tpu.vector_store %arg5[%c0_26, %c0_27], %46 {strides = array<i32>} : memref<24x384xf32, #tpu.memory_space<vmem>>, vector<24x384xf32>,
    %48 = vector.extract_strided_slice %1 {offsets = [0, 80], sizes = [4, 384], strides = [1, 1]} : vector<4x512xf32> to vector<4x384xf32>
    %49 = vector.extract_strided_slice %1 {offsets = [0, 81], sizes = [4, 384], strides = [1, 1]} : vector<4x512xf32> to vector<4x384xf32>
    %50 = vector.extract_strided_slice %1 {offsets = [0, 82], sizes = [4, 384], strides = [1, 1]} : vector<4x512xf32> to vector<4x384xf32>
    %51 = vector.extract_strided_slice %1 {offsets = [0, 83], sizes = [4, 384], strides = [1, 1]} : vector<4x512xf32> to vector<4x384xf32>
    %52 = vector.extract_strided_slice %1 {offsets = [0, 84], sizes = [4, 384], strides = [1, 1]} : vector<4x512xf32> to vector<4x384xf32>
    %53 = tpu.concatenate %48, %49, %50, %51, %52 in 0 : vector<4x384xf32>, vector<4x384xf32>, vector<4x384xf32>, vector<4x384xf32>, vector<4x384xf32> -> vector<20x384xf32>
    %c4 = arith.constant 4 : index
    %c0_28 = arith.constant 0 : index
    %c0_29 = arith.constant 0 : index
    %54 = vector.load %arg2[%c4, %c0_28, %c0_29] : memref<5x24x20xf32, #tpu.memory_space<vmem>>, vector<1x24x20xf32>
    %55 = vector.shape_cast %54 : vector<1x24x20xf32> to vector<24x20xf32>
    %cst_30 = arith.constant dense<0.000000e+00> : vector<24x384xf32>
    %56 = tpu.matmul %55, %53, %cst_30 {dimension_numbers = #tpu.dot_dimension_numbers<[1], [0], [0], [1], [0, 0, 1, 1], [], []>} : vector<24x20xf32>, vector<20x384xf32>, vector<24x384xf32> -> vector<24x384xf32>
    %c0_31 = arith.constant 0 : index
    %c0_32 = arith.constant 0 : index
    %57 = vector.load %arg5[%c0_31, %c0_32] : memref<24x384xf32, #tpu.memory_space<vmem>>, vector<24x384xf32>
    %58 = arith.addf %57, %56 : vector<24x384xf32>
    %c0_33 = arith.constant 0 : index
    %c0_34 = arith.constant 0 : index
    %59 = vector.load %arg5[%c0_33, %c0_34] : memref<24x384xf32, #tpu.memory_space<vmem>>, vector<24x384xf32>
    tpu.vector_store %arg5[%c0_33, %c0_34], %58 {strides = array<i32>} : memref<24x384xf32, #tpu.memory_space<vmem>>, vector<24x384xf32>,
    %c0_35 = arith.constant 0 : index
    %c0_36 = arith.constant 0 : index
    %60 = vector.load %arg5[%c0_35, %c0_36] : memref<24x384xf32, #tpu.memory_space<vmem>>, vector<24x384xf32>
    %c0_37 = arith.constant 0 : index
    %c0_38 = arith.constant 0 : index
    %61 = vector.load %arg3[%c0_37, %c0_38] : memref<24x1xf32, #tpu.memory_space<vmem>>, vector<24x1xf32>
    %62 = vector.broadcast %61 : vector<24x1xf32> to vector<24x384xf32>
    %63 = arith.addf %60, %62 : vector<24x384xf32>
    %cst_39 = arith.constant 0.000000e+00 : f32
    %64 = vector.broadcast %cst_39 : f32 to vector<24x384xf32>
    %65 = arith.maximumf %63, %64 : vector<24x384xf32>
    %66 = vector.extract_strided_slice %65 {offsets = [0, 0], sizes = [8, 384], strides = [1, 1]} : vector<24x384xf32> to vector<8x384xf32>
    %67 = vector.extract_strided_slice %65 {offsets = [8, 0], sizes = [8, 384], strides = [1, 1]} : vector<24x384xf32> to vector<8x384xf32>
    %68 = arith.addf %66, %67 : vector<8x384xf32>
    %69 = vector.extract_strided_slice %65 {offsets = [16, 0], sizes = [8, 384], strides = [1, 1]} : vector<24x384xf32> to vector<8x384xf32>
    %70 = arith.addf %68, %69 : vector<8x384xf32>
    %c0_40 = arith.constant 0 : index
    %c0_41 = arith.constant 0 : index
    %c0_42 = arith.constant 0 : index
    %71 = vector.load %arg4[%c0_40, %c0_41, %c0_42] : memref<1x8x384xf32, #tpu.memory_space<vmem>>, vector<1x8x384xf32>
    %72 = vector.shape_cast %71 : vector<1x8x384xf32> to vector<8x384xf32>
    %73 = vector.shape_cast %70 : vector<8x384xf32> to vector<1x8x384xf32>
    tpu.vector_store %arg4[%c0_40, %c0_41, %c0_42], %73 {strides = array<i32>} : memref<1x8x384xf32, #tpu.memory_space<vmem>>, vector<1x8x384xf32>,
    return
  }
  func.func @transform_0(%arg0: i32) -> (i32, i32, i32) {
    %c0_i32 = arith.constant 0 : i32
    %c0_i32_0 = arith.constant 0 : i32
    %c0_i32_1 = arith.constant 0 : i32
    return %arg0, %c0_i32, %c0_i32_0 : i32, i32, i32
  }
  func.func @transform_1(%arg0: i32) -> (i32, i32, i32) {
    %c0_i32 = arith.constant 0 : i32
    %c0_i32_0 = arith.constant 0 : i32
    %c0_i32_1 = arith.constant 0 : i32
    %c0_i32_2 = arith.constant 0 : i32
    return %c0_i32, %c0_i32_0, %c0_i32_1 : i32, i32, i32
  }
  func.func @transform_2(%arg0: i32) -> (i32, i32) {
    %c0_i32 = arith.constant 0 : i32
    %c0_i32_0 = arith.constant 0 : i32
    %c0_i32_1 = arith.constant 0 : i32
    return %c0_i32, %c0_i32_0 : i32, i32
  }
  func.func @transform_3(%arg0: i32) -> (i32, i32, i32) {
    %c0_i32 = arith.constant 0 : i32
    %c0_i32_0 = arith.constant 0 : i32
    %c0_i32_1 = arith.constant 0 : i32
    return %arg0, %c0_i32, %c0_i32_0 : i32, i32, i32
  }
}

</mosaic_0001>

<llo_original>
// kernel: tpu_custom_call.1
$region0: #{tpu_custom_call.1}
  #allocation0 [shape = 'u32[]', space=smem, size = 0x4, offset = 0x4, fixed_abs, tag = 'smem constant byte address 0x4 - core index']
  #allocation1 [shape = 'u32[144,128]{1,0:T(1,128)}', space=vmem, size = 0x12000, scoped, tag = 'internal scratch']
  #allocation2 [shape = 'f32[24,384]{1,0:T(8,128)}', space=vmem, size = 0x9000, scoped, tag = 'scratch operand']
  %s0 = inlined_call_operand.hbm [shape: f32[2,4,512], index: 0, kind: input, shape index: {}]
  %s1 = inlined_call_operand.hbm [shape: f32[5,24,20], index: 1, kind: input, shape index: {}]
  %s2 = inlined_call_operand.vmem [shape: f32[24,1], index: 2, kind: input, shape index: {}]
  %s3 = inlined_call_operand.hbm [shape: f32[2,8,384], index: 3, kind: output, shape index: {}]
  %s4 = sld [smem:[#allocation0]]
  $region53: #{tpu_custom_call.1} parent=0
    _
  %s6 = ssub.s32 1, %s4
  %s7 = scalar_select 0, %s6, %s4
  $region1: #{tpu_custom_call.1} parent=0
    #allocation3 [shape = 'u8[16384]{0}', space=vmem, size = 0x4000, scoped, tag = 'input window, operand 0']
    #allocation4 [shape = 's32[2]{0}', space=sflag, size = 0x8, scoped, tag = 'scoped memory for tpu_custom_call.1']
    #allocation5 [shape = 's32[2]{0}', space=sflag, size = 0x8, scoped, tag = 'scoped memory for tpu_custom_call.1']
    #allocation6 [shape = 'u8[61440]{0}', space=vmem, size = 0xf000, scoped, tag = 'input window, operand 1, single buffered']
    #allocation7 [shape = 's32[1]{0}', space=sflag, size = 0x4, scoped, tag = 'scoped memory for tpu_custom_call.1']
    #allocation8 [shape = 'u8[24576]{0}', space=vmem, size = 0x6000, scoped, tag = 'output window, operand 0']
    %8 = vsyncpa [#allocation4], 0
    %s9 = scalar_lea.sflag [#allocation4], 1
    %10 = vsyncpa %s9, 0
    %11 = vsyncpa [#allocation7], 0
    %12 = vsyncpa [#allocation5], 0
    %s13 = scalar_lea.sflag [#allocation5], 1
    %14 = vsyncpa %s13, 0
    loop: start=0, step=1, limit=4
    $region2: #{tpu_custom_call.1} parent=1 // loop_pre_header
      _
    $region3: #{tpu_custom_call.1} parent=1 // loop_header
      %s16 = sphi 0, %s20
      %p17 = scmp.ge.s32.totalorder %s16, 4
      %s26 = sphi 0, %s28
      %s29 = sphi 0, %s26
      %s30 = sphi 0, %s29
      %s46 = sphi 0, %s30
      %s50 = sphi 0, %s50
      %s52 = sphi 0, %s50
      %s53 = sphi 0, %s52
      %s67 = sphi 0, %s53
      %s71 = sphi 0, %s71
      %s73 = sphi 0, %s71
      %s74 = sphi 0, %s73
      %s88 = sphi 0, %s74
      %s94 = sphi 0, %s96
      %s97 = sphi 0, %s94
      %s98 = sphi 0, %s97
      %s114 = sphi 0, %s98
    $region4: #{tpu_custom_call.1} parent=1 // loop_header_branch
      %19 = sbr.rel (%p17) target = $region8
    $region5: #{tpu_custom_call.1} parent=1 // loop_body
      %s21 = ssub.s32 %s16, 1
      %s22 = ssub.s32 %s16, 2
      %s23 = sadd.s32 %s16, 1
      %s24 = ssub.s32 %s16, %s23
      %p25 = scmp.eq.s32.totalorder %s24, 0
      %s27 = sadd.s32 %s26, 1
      %s28 = scalar_select %p25, %s26, %s27
      %p31 = pneg %p25
      %p32 = scmp.eq.s32.totalorder %s16, 1
      %p33 = por %p31, %p32
      %p34 = scmp.ne.s32.totalorder %s26, %s29
      %p35 = scmp.eq.s32.totalorder %s16, 0
      %p36 = por %p34, %p35
      %p37 = scmp.ne.s32.totalorder %s26, %s29
      %p38 = scmp.eq.s32.totalorder %s21, 1
      %p39 = por %p37, %p38
      %p40 = scmp.ne.s32.totalorder %s29, %s30
      %p41 = scmp.eq.s32.totalorder %s21, 0
      %p42 = por %p40, %p41
      %p43 = scmp.ne.s32.totalorder %s29, %s30
      %p44 = scmp.eq.s32.totalorder %s22, 1
      %p45 = por %p43, %p44
      %p47 = scmp.ne.s32.totalorder %s30, %s46
      %p48 = scmp.eq.s32.totalorder %s22, 0
      %p49 = por %p47, %p48
      %s51 = sadd.s32 %s50, 1
      %p54 = scmp.eq.s32.totalorder %s16, 1
      %p55 = scmp.ne.s32.totalorder %s50, %s52
      %p56 = scmp.eq.s32.totalorder %s16, 0
      %p57 = por %p55, %p56
      %p58 = scmp.ne.s32.totalorder %s50, %s52
      %p59 = scmp.eq.s32.totalorder %s21, 1
      %p60 = por %p58, %p59
      %p61 = scmp.ne.s32.totalorder %s52, %s53
      %p62 = scmp.eq.s32.totalorder %s21, 0
      %p63 = por %p61, %p62
      %p64 = scmp.ne.s32.totalorder %s52, %s53
      %p65 = scmp.eq.s32.totalorder %s22, 1
      %p66 = por %p64, %p65
      %p68 = scmp.ne.s32.totalorder %s53, %s67
      %p69 = scmp.eq.s32.totalorder %s22, 0
      %p70 = por %p68, %p69
      %s72 = sadd.s32 %s71, 1
      %p75 = scmp.eq.s32.totalorder %s16, 1
      %p76 = scmp.ne.s32.totalorder %s71, %s73
      %p77 = scmp.eq.s32.totalorder %s16, 0
      %p78 = por %p76, %p77
      %p79 = scmp.ne.s32.totalorder %s71, %s73
      %p80 = scmp.eq.s32.totalorder %s21, 1
      %p81 = por %p79, %p80
      %p82 = scmp.ne.s32.totalorder %s73, %s74
      %p83 = scmp.eq.s32.totalorder %s21, 0
      %p84 = por %p82, %p83
      %p85 = scmp.ne.s32.totalorder %s73, %s74
      %p86 = scmp.eq.s32.totalorder %s22, 1
      %p87 = por %p85, %p86
      %p89 = scmp.ne.s32.totalorder %s74, %s88
      %p90 = scmp.eq.s32.totalorder %s22, 0
      %p91 = por %p89, %p90
      %s92 = ssub.s32 %s16, %s23
      %p93 = scmp.eq.s32.totalorder %s92, 0
      %s95 = sadd.s32 %s94, 1
      %s96 = scalar_select %p93, %s94, %s95
      %p99 = pneg %p93
      %p100 = scmp.eq.s32.totalorder %s16, 1
      %p101 = por %p99, %p100
      %p102 = scmp.ne.s32.totalorder %s94, %s97
      %p103 = scmp.eq.s32.totalorder %s16, 0
      %p104 = por %p102, %p103
      %p105 = scmp.ne.s32.totalorder %s94, %s97
      %p106 = scmp.eq.s32.totalorder %s21, 1
      %p107 = por %p105, %p106
      %p108 = scmp.ne.s32.totalorder %s97, %s98
      %p109 = scmp.eq.s32.totalorder %s21, 0
      %p110 = por %p108, %p109
      %p111 = scmp.ne.s32.totalorder %s97, %s98
      %p112 = scmp.eq.s32.totalorder %s22, 1
      %p113 = por %p111, %p112
      %p115 = scmp.ne.s32.totalorder %s98, %s114
      %p116 = scmp.eq.s32.totalorder %s22, 0
      %p117 = por %p115, %p116
      %p118 = scmp.le.s32.totalorder 1, %s16
      %p119 = scmp.lt.s32.totalorder %s16, 3
      %p120 = pnand %p118, %p119
      %p121 = pneg %p120
      // Predicated region
      $region9: #{tpu_custom_call.1} parent=5 // pred_check
        _
      $region10: #{tpu_custom_call.1} parent=5 // pred_check_branch
        %123 = sbr.rel (%p120) target = $region12
      $region11: #{tpu_custom_call.1} parent=5 // pred_region
        %s124 = ssub.s32 %s16, 1
        // Predicated region
        $region13: #{tpu_custom_call.1} parent=11 // pred_check
          %p125 = pneg %p63
        $region14: #{tpu_custom_call.1} parent=11 // pred_check_branch
          %127 = sbr.rel (%p125) target = $region16
        $region15: #{tpu_custom_call.1} parent=11 // pred_region
          %s129 = ssub.s32 1920, 1920
          %130 = vsyncadd [#allocation7], %s129
          %s131 = sshll.u32 [#allocation6], 4
          %s132 = int_to_ptr.vmem [resolvable:$true] %s131
          %137 = dma.hbm_to_vmem [thread:$0]  %s1, 1920, %s132, [#allocation7], 128, 128, 8
        $region16: #{tpu_custom_call.1} parent=11 // pred_fallthru
          _
        // Predicated region
        $region17: #{tpu_custom_call.1} parent=11 // pred_check
          %p138 = pneg %p84
        $region18: #{tpu_custom_call.1} parent=11 // pred_check_branch
          %140 = sbr.rel (%p138) target = $region20
        $region19: #{tpu_custom_call.1} parent=11 // pred_region
          _
        $region20: #{tpu_custom_call.1} parent=11 // pred_fallthru
          _
      $region12: #{tpu_custom_call.1} parent=5 // pred_fallthru
        _
      %p141 = scmp.lt.s32.totalorder %s16, 2
      // Predicated region
      $region21: #{tpu_custom_call.1} parent=5 // pred_check
        %p142 = pneg %p141
      $region22: #{tpu_custom_call.1} parent=5 // pred_check_branch
        %144 = sbr.rel (%p142) target = $region24
      $region23: #{tpu_custom_call.1} parent=5 // pred_region
        // Predicated region
        $region25: #{tpu_custom_call.1} parent=23 // pred_check
          %p145 = pneg %p36
        $region26: #{tpu_custom_call.1} parent=23 // pred_check_branch
          %147 = sbr.rel (%p145) target = $region28
        $region27: #{tpu_custom_call.1} parent=23 // pred_region
          %s148 = sand.u32 %s26, 1
          %s149 = scalar_lea.sflag [#allocation4], %s148
          %s150 = sand.u32 %s26, 1
          %s151 = smul.addr %s150, 16
          %s152 = scalar_lea.vmem [#allocation3], %s151
          %s154 = ssub.s32 256, 256
          %155 = vsyncadd %s149, %s154
          %s156 = smul.addr %s16, 4
          %s157 = smul.addr %s156, 64
          %s158 = scalar_lea.hbm %s0, %s157
          %s160 = sshll.u32 %s152, 4
          %s161 = int_to_ptr.vmem [resolvable:$true] %s160
          %163 = dma.hbm_to_vmem [thread:$0]  %s158, 256, %s161, %s149
        $region28: #{tpu_custom_call.1} parent=23 // pred_fallthru
          _
      $region24: #{tpu_custom_call.1} parent=5 // pred_fallthru
        _
      %p164 = scmp.le.s32.totalorder 1, %s16
      %p165 = scmp.lt.s32.totalorder %s16, 3
      %p166 = pnand %p164, %p165
      %p167 = pneg %p166
      // Predicated region
      $region29: #{tpu_custom_call.1} parent=5 // pred_check
        _
      $region30: #{tpu_custom_call.1} parent=5 // pred_check_branch
        %169 = sbr.rel (%p166) target = $region32
      $region31: #{tpu_custom_call.1} parent=5 // pred_region
        %s170 = ssub.s32 %s16, 1
        %s171 = sand.u32 %s29, 1
        %s172 = scalar_lea.sflag [#allocation4], %s171
        %s173 = sand.u32 %s29, 1
        %s174 = smul.addr %s173, 16
        %s175 = scalar_lea.vmem [#allocation3], %s174
        // Predicated region
        $region33: #{tpu_custom_call.1} parent=31 // pred_check
          %p176 = pneg %p42
        $region34: #{tpu_custom_call.1} parent=31 // pred_check_branch
          %178 = sbr.rel (%p176) target = $region36
        $region35: #{tpu_custom_call.1} parent=31 // pred_region
          %179 = dma.done %s172, 256
        $region36: #{tpu_custom_call.1} parent=31 // pred_fallthru
          _
        // Predicated region
        $region37: #{tpu_custom_call.1} parent=31 // pred_check
          %p180 = pneg %p63
        $region38: #{tpu_custom_call.1} parent=31 // pred_check_branch
          %182 = sbr.rel (%p180) target = $region40
        $region39: #{tpu_custom_call.1} parent=31 // pred_region
          %183 = dma.done [#allocation7], 1920
        $region40: #{tpu_custom_call.1} parent=31 // pred_fallthru
          _
        %s184 = sand.u32 %s29, 1
        %s185 = scalar_lea.sflag [#allocation4], %s184
        %s186 = sand.u32 %s29, 1
        %s187 = smul.addr %s186, 16
        %s188 = scalar_lea.vmem [#allocation3], %s187
        %p189 = pneg %p42
        %p190 = pneg %p39
        %p191 = pneg %p63
        %p192 = pneg %p60
        %p193 = pneg %p84
        %p194 = pneg %p81
        %p195 = pneg %p110
        %p196 = pneg %p107
        %s197 = sand.u32 %s97, 1
        %s198 = scalar_lea.sflag [#allocation5], %s197
        %s199 = sand.u32 %s97, 1
        %s200 = smul.addr %s199, 24
        %s201 = scalar_lea.vmem [#allocation8], %s200
        %v202 = vld [vmem:[%s175] sm:$0xff]
        %v203 = vld [vmem:[%s175 + $0x8] sm:$0xff]
        %v206 = vcombine.high %v202, %v202
        %v208 = vcombine.low %v202, %v202
        %v209 = vcombine.low %v203, %v203
        %210 = vrot.lane.b32.xlu0 %v208, 127
        %v211 = vpop.permute.xlu0 %210
        %212 = vrot.lane.b32.xlu0 %v202, 127
        %v213 = vpop.permute.xlu0 %212
        %214 = vrot.lane.b32.xlu0 %v209, 127
        %v215 = vpop.permute.xlu0 %214
        %216 = vrot.lane.b32.xlu0 %v203, 127
        %v217 = vpop.permute.xlu0 %216
        %vm218 = vcmask 1039360
        %v219 = vsel %vm218, %v211, %v213
        %v220 = vsel %vm218, %v213, %v215
        %v221 = vsel %vm218, %v215, %v217
        %v225 = vcombine.high %v203, %v203
        %226 = vrot.lane.b32.xlu0 %v202, 126
        %v227 = vpop.permute.xlu0 %226
        %228 = vrot.lane.b32.xlu0 %v206, 126
        %v229 = vpop.permute.xlu0 %228
        %230 = vrot.lane.b32.xlu0 %v203, 126
        %v231 = vpop.permute.xlu0 %230
        %232 = vrot.lane.b32.xlu0 %v225, 126
        %v233 = vpop.permute.xlu0 %232
        %vm234 = vcmask 1031168
        %v235 = vsel %vm234, %v227, %v229
        %v236 = vsel %vm234, %v229, %v231
        %v237 = vsel %vm234, %v231, %v233
        %241 = vrot.lane.b32.xlu0 %v208, 125
        %v242 = vpop.permute.xlu0 %241
        %243 = vrot.lane.b32.xlu0 %v202, 125
        %v244 = vpop.permute.xlu0 %243
        %245 = vrot.lane.b32.xlu0 %v209, 125
        %v246 = vpop.permute.xlu0 %245
        %247 = vrot.lane.b32.xlu0 %v203, 125
        %v248 = vpop.permute.xlu0 %247
        %vm249 = vcmask 1022976
        %v250 = vsel %vm249, %v242, %v244
        %v251 = vsel %vm249, %v244, %v246
        %v252 = vsel %vm249, %v246, %v248
        %256 = vrot.lane.b32.xlu0 %v202, 124
        %v257 = vpop.permute.xlu0 %256
        %258 = vrot.lane.b32.xlu0 %v206, 124
        %v259 = vpop.permute.xlu0 %258
        %260 = vrot.lane.b32.xlu0 %v203, 124
        %v261 = vpop.permute.xlu0 %260
        %262 = vrot.lane.b32.xlu0 %v225, 124
        %v263 = vpop.permute.xlu0 %262
        %vm264 = vcmask 1014784
        %v265 = vsel %vm264, %v257, %v259
        %v266 = vsel %vm264, %v259, %v261
        %v267 = vsel %vm264, %v261, %v263
        %vm268 = vcmask 1043456
        %v269 = vsel %vm268, %v202, %v219
        %v270 = vsel %vm268, %v206, %v220
        %v271 = vsel %vm268, %v203, %v221
        %v272 = vsel %vm268, %v235, %v250
        %v273 = vsel %vm268, %v236, %v251
        %v274 = vsel %vm268, %v237, %v252
        %v275 = vld [vmem:[#allocation6] sm:$0xff]
        %v276 = vld [vmem:[#allocation6 + $0x8] sm:$0xff]
        %v277 = vld [vmem:[#allocation6 + $0x10] sm:$0xff]
        %vm278 = vcmask 162816
        %v280 = vsel %vm278, %v275, 0
        %v283 = vsel %vm278, %v276, 0
        %v286 = vsel %vm278, %v277, 0
        %v288 = vsel %vm268, %v265, 0
        %v290 = vsel %vm268, %v266, 0
        %v292 = vsel %vm268, %v267, 0
        %294 = vmatprep.subr.mxu0 %v270
        %295 = vmatpush1.msra.mxu0 %v269
        %296 = vmatprep.subr.mxu0 %v273
        %297 = vmatpush1.msra.mxu0 %v272
        %298 = vmatprep.subr.mxu0 %v290
        %299 = vmatpush1.msra.mxu0 %v288
        %300 = vmatprep.subr.mxu0 0.0
        %301 = vmatpush1.msra.mxu0 0.0
        %302 = vmatprep.subr.mxu0 0.0
        %303 = vmatpush1.msra.mxu0 0.0
        %304 = vmatprep.subr.mxu0 0.0
        %305 = vmatpush1.msra.mxu0 0.0
        %306 = vmatprep.subr.mxu0 0.0
        %307 = vmatpush1.msra.mxu0 0.0
        %308 = vmatprep.subr.mxu0 0.0
        %309 = vmatpush1.msra.mxu0 0.0
        %310 = vmatprep.subr.mxu0 0.0
        %311 = vmatpush1.msra.mxu0 0.0
        %312 = vmatprep.subr.mxu0 0.0
        %313 = vmatpush1.msra.mxu0 0.0
        %314 = vmatprep.subr.mxu0 0.0
        %315 = vmatpush1.msra.mxu0 0.0
        %316 = vmatprep.subr.mxu0 0.0
        %317 = vmatpush1.msra.mxu0 0.0
        %318 = vmatprep.subr.mxu0 0.0
        %319 = vmatpush1.msra.mxu0 0.0
        %320 = vmatprep.subr.mxu0 0.0
        %321 = vmatpush1.msra.mxu0 0.0
        %322 = vmatprep.subr.mxu0 0.0
        %323 = vmatpush1.msra.mxu0 0.0
        %324 = vmatprep.subr.mxu0 0.0
        %325 = vmatpush1.msra.mxu0 0.0
        %326 = vmatprep.subr.mxu0 0.0
        %327 = vmatpush1.msra.mxu0 0.0
        %328 = vmatprep.subr.mxu0 0.0
        %329 = vmatpush1.msra.mxu0 0.0
        %330 = vmatprep.subr.mxu0 0.0
        %331 = vmatpush1.msra.mxu0 0.0
        %332 = vmatprep.subr.mxu0 0.0
        %333 = vmatpush1.msra.mxu0 0.0
        %334 = vmatprep.subr.mxu0 0.0
        %335 = vmatpush1.msra.mxu0 0.0
        %336 = vmatprep.subr.mxu0 0.0
        %337 = vmatpush1.msra.mxu0 0.0
        %338 = vmatprep.subr.mxu0 0.0
        %339 = vmatpush1.msra.mxu0 0.0
        %340 = vmatprep.subr.mxu0 0.0
        %341 = vmatpush1.msra.mxu0 0.0
        %342 = vmatprep.subr.mxu0 0.0
        %343 = vmatpush1.msra.mxu0 0.0
        %344 = vmatprep.subr.mxu0 0.0
        %345 = vmatpush1.msra.mxu0 0.0
        %346 = vmatprep.subr.mxu0 0.0
        %347 = vmatpush1.msra.mxu0 0.0
        %348 = vmatprep.subr.mxu0 0.0
        %349 = vmatpush1.msra.mxu0 0.0
        %350 = vmatprep.subr.mxu0 0.0
        %351 = vmatpush1.msra.mxu0 0.0
        %352 = vmatprep.subr.mxu0 0.0
        %353 = vmatpush1.msra.mxu0 0.0
        %354 = vmatprep.subr.mxu0 0.0
        %355 = vmatpush1.msra.mxu0 0.0
        %356 = vmatprep.subr.mxu0 0.0
        %357 = vmatpush1.msra.mxu0 0.0
        %358 = vmatprep.mubr.f32.mxu0 0.0
        %359 = vmatmul.mubr.f32.gmra.mrb[0].mxu0 %v280
        %v360 = vpop.f32.mrb[0].mxu0
        %v361 = vadd.f32 0.0, %v360
        %v362 = vpop.f32.mrb[0].mxu0
        %v363 = vadd.f32 0.0, %v362
        %364 = vmatprep.mubr.f32.mxu0 0.0
        %365 = vmatmul.mubr.f32.gmra.mrb[0].mxu0 %v283
        %v366 = vpop.f32.mrb[0].mxu0
        %v367 = vadd.f32 0.0, %v366
        %v368 = vpop.f32.mrb[0].mxu0
        %v369 = vadd.f32 0.0, %v368
        %370 = vmatprep.mubr.f32.mxu0 0.0
        %371 = vmatmul.mubr.f32.gmra.mrb[0].mxu0 %v286
        %v372 = vpop.f32.mrb[0].mxu0
        %v373 = vadd.f32 0.0, %v372
        %v374 = vpop.f32.mrb[0].mxu0
        %v375 = vadd.f32 0.0, %v374
        %376 = vdwg.mxu0
        %377 = vmatprep.subr.mxu0 0.0
        %378 = vmatpush1.msra.mxu0 %v271
        %379 = vmatprep.subr.mxu0 0.0
        %380 = vmatpush1.msra.mxu0 %v274
        %381 = vmatprep.subr.mxu0 0.0
        %382 = vmatpush1.msra.mxu0 %v292
        %383 = vmatprep.subr.mxu0 0.0
        %384 = vmatpush1.msra.mxu0 0.0
        %385 = vmatprep.subr.mxu0 0.0
        %386 = vmatpush1.msra.mxu0 0.0
        %387 = vmatprep.subr.mxu0 0.0
        %388 = vmatpush1.msra.mxu0 0.0
        %389 = vmatprep.subr.mxu0 0.0
        %390 = vmatpush1.msra.mxu0 0.0
        %391 = vmatprep.subr.mxu0 0.0
        %392 = vmatpush1.msra.mxu0 0.0
        %393 = vmatprep.subr.mxu0 0.0
        %394 = vmatpush1.msra.mxu0 0.0
        %395 = vmatprep.subr.mxu0 0.0
        %396 = vmatpush1.msra.mxu0 0.0
        %397 = vmatprep.subr.mxu0 0.0
        %398 = vmatpush1.msra.mxu0 0.0
        %399 = vmatprep.subr.mxu0 0.0
        %400 = vmatpush1.msra.mxu0 0.0
        %401 = vmatprep.subr.mxu0 0.0
        %402 = vmatpush1.msra.mxu0 0.0
        %403 = vmatprep.subr.mxu0 0.0
        %404 = vmatpush1.msra.mxu0 0.0
        %405 = vmatprep.subr.mxu0 0.0
        %406 = vmatpush1.msra.mxu0 0.0
        %407 = vmatprep.subr.mxu0 0.0
        %408 = vmatpush1.msra.mxu0 0.0
        %409 = vmatprep.subr.mxu0 0.0
        %410 = vmatpush1.msra.mxu0 0.0
        %411 = vmatprep.subr.mxu0 0.0
        %412 = vmatpush1.msra.mxu0 0.0
        %413 = vmatprep.subr.mxu0 0.0
        %414 = vmatpush1.msra.mxu0 0.0
        %415 = vmatprep.subr.mxu0 0.0
        %416 = vmatpush1.msra.mxu0 0.0
        %417 = vmatprep.subr.mxu0 0.0
        %418 = vmatpush1.msra.mxu0 0.0
        %419 = vmatprep.subr.mxu0 0.0
        %420 = vmatpush1.msra.mxu0 0.0
        %421 = vmatprep.subr.mxu0 0.0
        %422 = vmatpush1.msra.mxu0 0.0
        %423 = vmatprep.subr.mxu0 0.0
        %424 = vmatpush1.msra.mxu0 0.0
        %425 = vmatprep.subr.mxu0 0.0
        %426 = vmatpush1.msra.mxu0 0.0
        %427 = vmatprep.subr.mxu0 0.0
        %428 = vmatpush1.msra.mxu0 0.0
        %429 = vmatprep.subr.mxu0 0.0
        %430 = vmatpush1.msra.mxu0 0.0
        %431 = vmatprep.subr.mxu0 0.0
        %432 = vmatpush1.msra.mxu0 0.0
        %433 = vmatprep.subr.mxu0 0.0
        %434 = vmatpush1.msra.mxu0 0.0
        %435 = vmatprep.subr.mxu0 0.0
        %436 = vmatpush1.msra.mxu0 0.0
        %437 = vmatprep.subr.mxu0 0.0
        %438 = vmatpush1.msra.mxu0 0.0
        %439 = vmatprep.subr.mxu0 0.0
        %440 = vmatpush1.msra.mxu0 0.0
        %441 = vmatprep.mubr.f32.mxu0 0.0
        %442 = vmatmul.mubr.f32.gmra.mrb[0].mxu0 %v280
        %v443 = vpop.f32.mrb[0].mxu0
        %v444 = vadd.f32 0.0, %v443
        %v445 = vpop.f32.mrb[0].mxu0
        %446 = vmatprep.mubr.f32.mxu0 0.0
        %447 = vmatmul.mubr.f32.gmra.mrb[0].mxu0 %v283
        %v448 = vpop.f32.mrb[0].mxu0
        %v449 = vadd.f32 0.0, %v448
        %v450 = vpop.f32.mrb[0].mxu0
        %451 = vmatprep.mubr.f32.mxu0 0.0
        %452 = vmatmul.mubr.f32.gmra.mrb[0].mxu0 %v286
        %v453 = vpop.f32.mrb[0].mxu0
        %v454 = vadd.f32 0.0, %v453
        %v455 = vpop.f32.mrb[0].mxu0
        %456 = vdwg.mxu0
        %457 = vst [vmem:[#allocation2] sm:$0xff] %v361
        %458 = vst [vmem:[#allocation2 + $0x8] sm:$0xff] %v363
        %459 = vst [vmem:[#allocation2 + $0x10] sm:$0xff] %v444
        %460 = vst [vmem:[#allocation2 + $0x18] sm:$0xff] %v367
        %461 = vst [vmem:[#allocation2 + $0x20] sm:$0xff] %v369
        %462 = vst [vmem:[#allocation2 + $0x28] sm:$0xff] %v449
        %463 = vst [vmem:[#allocation2 + $0x30] sm:$0xff] %v373
        %464 = vst [vmem:[#allocation2 + $0x38] sm:$0xff] %v375
        %465 = vst [vmem:[#allocation2 + $0x40] sm:$0xff] %v454
        %v470 = vsel %vm268, %v225, %v217
        %v471 = vsel %vm268, %v233, %v248
        %s472 = scalar_lea.vmem [#allocation6], 24
        %v473 = vld [vmem:[%s472] sm:$0xff]
        %v474 = vld [vmem:[%s472 + $0x8] sm:$0xff]
        %v475 = vld [vmem:[%s472 + $0x10] sm:$0xff]
        %484 = vrot.lane.b32.xlu0 %v269, 108
        %v485 = vpop.permute.xlu0 %484
        %486 = vrot.lane.b32.xlu0 %v270, 108
        %v487 = vpop.permute.xlu0 %486
        %488 = vrot.lane.b32.xlu0 %v271, 108
        %v489 = vpop.permute.xlu0 %488
        %490 = vrot.lane.b32.xlu0 %v470, 108
        %v491 = vpop.permute.xlu0 %490
        %492 = vrot.lane.b32.xlu0 %v272, 108
        %v493 = vpop.permute.xlu0 %492
        %494 = vrot.lane.b32.xlu0 %v273, 108
        %v495 = vpop.permute.xlu0 %494
        %496 = vrot.lane.b32.xlu0 %v274, 108
        %v497 = vpop.permute.xlu0 %496
        %498 = vrot.lane.b32.xlu0 %v471, 108
        %v499 = vpop.permute.xlu0 %498
        %500 = vrot.lane.b32.xlu0 %v265, 108
        %v501 = vpop.permute.xlu0 %500
        %502 = vrot.lane.b32.xlu0 %v266, 108
        %v503 = vpop.permute.xlu0 %502
        %504 = vrot.lane.b32.xlu0 %v267, 108
        %v505 = vpop.permute.xlu0 %504
        %506 = vrot.lane.b32.xlu0 %v263, 108
        %v507 = vpop.permute.xlu0 %506
        %vm508 = vcmask 883712
        %v509 = vsel %vm508, %v485, %v487
        %v510 = vsel %vm508, %v487, %v489
        %v511 = vsel %vm508, %v489, %v491
        %v512 = vsel %vm508, %v493, %v495
        %v513 = vsel %vm508, %v495, %v497
        %v514 = vsel %vm508, %v497, %v499
        %v515 = vsel %vm508, %v501, %v503
        %v516 = vsel %vm508, %v503, %v505
        %v517 = vsel %vm508, %v505, %v507
        %v525 = vsel %vm278, %v473, 0
        %v528 = vsel %vm278, %v474, 0
        %v531 = vsel %vm278, %v475, 0
        %v533 = vsel %vm268, %v515, 0
        %v535 = vsel %vm268, %v516, 0
        %v537 = vsel %vm268, %v517, 0
        %539 = vmatprep.subr.mxu0 %v510
        %540 = vmatpush1.msra.mxu0 %v509
        %541 = vmatprep.subr.mxu0 %v513
        %542 = vmatpush1.msra.mxu0 %v512
        %543 = vmatprep.subr.mxu0 %v535
        %544 = vmatpush1.msra.mxu0 %v533
        %545 = vmatprep.subr.mxu0 0.0
        %546 = vmatpush1.msra.mxu0 0.0
        %547 = vmatprep.subr.mxu0 0.0
        %548 = vmatpush1.msra.mxu0 0.0
        %549 = vmatprep.subr.mxu0 0.0
        %550 = vmatpush1.msra.mxu0 0.0
        %551 = vmatprep.subr.mxu0 0.0
        %552 = vmatpush1.msra.mxu0 0.0
        %553 = vmatprep.subr.mxu0 0.0
        %554 = vmatpush1.msra.mxu0 0.0
        %555 = vmatprep.subr.mxu0 0.0
        %556 = vmatpush1.msra.mxu0 0.0
        %557 = vmatprep.subr.mxu0 0.0
        %558 = vmatpush1.msra.mxu0 0.0
        %559 = vmatprep.subr.mxu0 0.0
        %560 = vmatpush1.msra.mxu0 0.0
        %561 = vmatprep.subr.mxu0 0.0
        %562 = vmatpush1.msra.mxu0 0.0
        %563 = vmatprep.subr.mxu0 0.0
        %564 = vmatpush1.msra.mxu0 0.0
        %565 = vmatprep.subr.mxu0 0.0
        %566 = vmatpush1.msra.mxu0 0.0
        %567 = vmatprep.subr.mxu0 0.0
        %568 = vmatpush1.msra.mxu0 0.0
        %569 = vmatprep.subr.mxu0 0.0
        %570 = vmatpush1.msra.mxu0 0.0
        %571 = vmatprep.subr.mxu0 0.0
        %572 = vmatpush1.msra.mxu0 0.0
        %573 = vmatprep.subr.mxu0 0.0
        %574 = vmatpush1.msra.mxu0 0.0
        %575 = vmatprep.subr.mxu0 0.0
        %576 = vmatpush1.msra.mxu0 0.0
        %577 = vmatprep.subr.mxu0 0.0
        %578 = vmatpush1.msra.mxu0 0.0
        %579 = vmatprep.subr.mxu0 0.0
        %580 = vmatpush1.msra.mxu0 0.0
        %581 = vmatprep.subr.mxu0 0.0
        %582 = vmatpush1.msra.mxu0 0.0
        %583 = vmatprep.subr.mxu0 0.0
        %584 = vmatpush1.msra.mxu0 0.0
        %585 = vmatprep.subr.mxu0 0.0
        %586 = vmatpush1.msra.mxu0 0.0
        %587 = vmatprep.subr.mxu0 0.0
        %588 = vmatpush1.msra.mxu0 0.0
        %589 = vmatprep.subr.mxu0 0.0
        %590 = vmatpush1.msra.mxu0 0.0
        %591 = vmatprep.subr.mxu0 0.0
        %592 = vmatpush1.msra.mxu0 0.0
        %593 = vmatprep.subr.mxu0 0.0
        %594 = vmatpush1.msra.mxu0 0.0
        %595 = vmatprep.subr.mxu0 0.0
        %596 = vmatpush1.msra.mxu0 0.0
        %597 = vmatprep.subr.mxu0 0.0
        %598 = vmatpush1.msra.mxu0 0.0
        %599 = vmatprep.subr.mxu0 0.0
        %600 = vmatpush1.msra.mxu0 0.0
        %601 = vmatprep.subr.mxu0 0.0
        %602 = vmatpush1.msra.mxu0 0.0
        %603 = vmatprep.mubr.f32.mxu0 0.0
        %604 = vmatmul.mubr.f32.gmra.mrb[0].mxu0 %v525
        %v605 = vpop.f32.mrb[0].mxu0
        %v606 = vadd.f32 0.0, %v605
        %v607 = vpop.f32.mrb[0].mxu0
        %v608 = vadd.f32 0.0, %v607
        %609 = vmatprep.mubr.f32.mxu0 0.0
        %610 = vmatmul.mubr.f32.gmra.mrb[0].mxu0 %v528
        %v611 = vpop.f32.mrb[0].mxu0
        %v612 = vadd.f32 0.0, %v611
        %v613 = vpop.f32.mrb[0].mxu0
        %v614 = vadd.f32 0.0, %v613
        %615 = vmatprep.mubr.f32.mxu0 0.0
        %616 = vmatmul.mubr.f32.gmra.mrb[0].mxu0 %v531
        %v617 = vpop.f32.mrb[0].mxu0
        %v618 = vadd.f32 0.0, %v617
        %v619 = vpop.f32.mrb[0].mxu0
        %v620 = vadd.f32 0.0, %v619
        %621 = vdwg.mxu0
        %622 = vmatprep.subr.mxu0 0.0
        %623 = vmatpush1.msra.mxu0 %v511
        %624 = vmatprep.subr.mxu0 0.0
        %625 = vmatpush1.msra.mxu0 %v514
        %626 = vmatprep.subr.mxu0 0.0
        %627 = vmatpush1.msra.mxu0 %v537
        %628 = vmatprep.subr.mxu0 0.0
        %629 = vmatpush1.msra.mxu0 0.0
        %630 = vmatprep.subr.mxu0 0.0
        %631 = vmatpush1.msra.mxu0 0.0
        %632 = vmatprep.subr.mxu0 0.0
        %633 = vmatpush1.msra.mxu0 0.0
        %634 = vmatprep.subr.mxu0 0.0
        %635 = vmatpush1.msra.mxu0 0.0
        %636 = vmatprep.subr.mxu0 0.0
        %637 = vmatpush1.msra.mxu0 0.0
        %638 = vmatprep.subr.mxu0 0.0
        %639 = vmatpush1.msra.mxu0 0.0
        %640 = vmatprep.subr.mxu0 0.0
        %641 = vmatpush1.msra.mxu0 0.0
        %642 = vmatprep.subr.mxu0 0.0
        %643 = vmatpush1.msra.mxu0 0.0
        %644 = vmatprep.subr.mxu0 0.0
        %645 = vmatpush1.msra.mxu0 0.0
        %646 = vmatprep.subr.mxu0 0.0
        %647 = vmatpush1.msra.mxu0 0.0
        %648 = vmatprep.subr.mxu0 0.0
        %649 = vmatpush1.msra.mxu0 0.0
        %650 = vmatprep.subr.mxu0 0.0
        %651 = vmatpush1.msra.mxu0 0.0
        %652 = vmatprep.subr.mxu0 0.0
        %653 = vmatpush1.msra.mxu0 0.0
        %654 = vmatprep.subr.mxu0 0.0
        %655 = vmatpush1.msra.mxu0 0.0
        %656 = vmatprep.subr.mxu0 0.0
        %657 = vmatpush1.msra.mxu0 0.0
        %658 = vmatprep.subr.mxu0 0.0
        %659 = vmatpush1.msra.mxu0 0.0
        %660 = vmatprep.subr.mxu0 0.0
        %661 = vmatpush1.msra.mxu0 0.0
        %662 = vmatprep.subr.mxu0 0.0
        %663 = vmatpush1.msra.mxu0 0.0
        %664 = vmatprep.subr.mxu0 0.0
        %665 = vmatpush1.msra.mxu0 0.0
        %666 = vmatprep.subr.mxu0 0.0
        %667 = vmatpush1.msra.mxu0 0.0
        %668 = vmatprep.subr.mxu0 0.0
        %669 = vmatpush1.msra.mxu0 0.0
        %670 = vmatprep.subr.mxu0 0.0
        %671 = vmatpush1.msra.mxu0 0.0
        %672 = vmatprep.subr.mxu0 0.0
        %673 = vmatpush1.msra.mxu0 0.0
        %674 = vmatprep.subr.mxu0 0.0
        %675 = vmatpush1.msra.mxu0 0.0
        %676 = vmatprep.subr.mxu0 0.0
        %677 = vmatpush1.msra.mxu0 0.0
        %678 = vmatprep.subr.mxu0 0.0
        %679 = vmatpush1.msra.mxu0 0.0
        %680 = vmatprep.subr.mxu0 0.0
        %681 = vmatpush1.msra.mxu0 0.0
        %682 = vmatprep.subr.mxu0 0.0
        %683 = vmatpush1.msra.mxu0 0.0
        %684 = vmatprep.subr.mxu0 0.0
        %685 = vmatpush1.msra.mxu0 0.0
        %686 = vmatprep.mubr.f32.mxu0 0.0
        %687 = vmatmul.mubr.f32.gmra.mrb[0].mxu0 %v525
        %v688 = vpop.f32.mrb[0].mxu0
        %v689 = vadd.f32 0.0, %v688
        %v690 = vpop.f32.mrb[0].mxu0
        %691 = vmatprep.mubr.f32.mxu0 0.0
        %692 = vmatmul.mubr.f32.gmra.mrb[0].mxu0 %v528
        %v693 = vpop.f32.mrb[0].mxu0
        %v694 = vadd.f32 0.0, %v693
        %v695 = vpop.f32.mrb[0].mxu0
        %696 = vmatprep.mubr.f32.mxu0 0.0
        %697 = vmatmul.mubr.f32.gmra.mrb[0].mxu0 %v531
        %v698 = vpop.f32.mrb[0].mxu0
        %v699 = vadd.f32 0.0, %v698
        %v700 = vpop.f32.mrb[0].mxu0
        %701 = vdwg.mxu0
        %v702 = vld [vmem:[#allocation2] sm:$0xff]
        %v703 = vld [vmem:[#allocation2 + $0x8] sm:$0xff]
        %v704 = vld [vmem:[#allocation2 + $0x10] sm:$0xff]
        %v705 = vld [vmem:[#allocation2 + $0x18] sm:$0xff]
        %v706 = vld [vmem:[#allocation2 + $0x20] sm:$0xff]
        %v707 = vld [vmem:[#allocation2 + $0x28] sm:$0xff]
        %v708 = vld [vmem:[#allocation2 + $0x30] sm:$0xff]
        %v709 = vld [vmem:[#allocation2 + $0x38] sm:$0xff]
        %v710 = vld [vmem:[#allocation2 + $0x40] sm:$0xff]
        %v711 = vadd.f32 %v702, %v606
        %v712 = vadd.f32 %v703, %v608
        %v713 = vadd.f32 %v704, %v689
        %v714 = vadd.f32 %v705, %v612
        %v715 = vadd.f32 %v706, %v614
        %v716 = vadd.f32 %v707, %v694
        %v717 = vadd.f32 %v708, %v618
        %v718 = vadd.f32 %v709, %v620
        %v719 = vadd.f32 %v710, %v699
        %720 = vst [vmem:[#allocation2] sm:$0xff] %v711
        %721 = vst [vmem:[#allocation2 + $0x8] sm:$0xff] %v712
        %722 = vst [vmem:[#allocation2 + $0x10] sm:$0xff] %v713
        %723 = vst [vmem:[#allocation2 + $0x18] sm:$0xff] %v714
        %724 = vst [vmem:[#allocation2 + $0x20] sm:$0xff] %v715
        %725 = vst [vmem:[#allocation2 + $0x28] sm:$0xff] %v716
        %726 = vst [vmem:[#allocation2 + $0x30] sm:$0xff] %v717
        %727 = vst [vmem:[#allocation2 + $0x38] sm:$0xff] %v718
        %728 = vst [vmem:[#allocation2 + $0x40] sm:$0xff] %v719
        %s729 = scalar_lea.vmem [#allocation6], 48
        %v730 = vld [vmem:[%s729] sm:$0xff]
        %v731 = vld [vmem:[%s729 + $0x8] sm:$0xff]
        %v732 = vld [vmem:[%s729 + $0x10] sm:$0xff]
        %733 = vrot.lane.b32.xlu0 %v269, 88
        %v734 = vpop.permute.xlu0 %733
        %735 = vrot.lane.b32.xlu0 %v270, 88
        %v736 = vpop.permute.xlu0 %735
        %737 = vrot.lane.b32.xlu0 %v271, 88
        %v738 = vpop.permute.xlu0 %737
        %739 = vrot.lane.b32.xlu0 %v470, 88
        %v740 = vpop.permute.xlu0 %739
        %741 = vrot.lane.b32.xlu0 %v272, 88
        %v742 = vpop.permute.xlu0 %741
        %743 = vrot.lane.b32.xlu0 %v273, 88
        %v744 = vpop.permute.xlu0 %743
        %745 = vrot.lane.b32.xlu0 %v274, 88
        %v746 = vpop.permute.xlu0 %745
        %747 = vrot.lane.b32.xlu0 %v471, 88
        %v748 = vpop.permute.xlu0 %747
        %749 = vrot.lane.b32.xlu0 %v265, 88
        %v750 = vpop.permute.xlu0 %749
        %751 = vrot.lane.b32.xlu0 %v266, 88
        %v752 = vpop.permute.xlu0 %751
        %753 = vrot.lane.b32.xlu0 %v267, 88
        %v754 = vpop.permute.xlu0 %753
        %755 = vrot.lane.b32.xlu0 %v263, 88
        %v756 = vpop.permute.xlu0 %755
        %vm757 = vcmask 719872
        %v758 = vsel %vm757, %v734, %v736
        %v759 = vsel %vm757, %v736, %v738
        %v760 = vsel %vm757, %v738, %v740
        %v761 = vsel %vm757, %v742, %v744
        %v762 = vsel %vm757, %v744, %v746
        %v763 = vsel %vm757, %v746, %v748
        %v764 = vsel %vm757, %v750, %v752
        %v765 = vsel %vm757, %v752, %v754
        %v766 = vsel %vm757, %v754, %v756
        %v774 = vsel %vm278, %v730, 0
        %v777 = vsel %vm278, %v731, 0
        %v780 = vsel %vm278, %v732, 0
        %v782 = vsel %vm268, %v764, 0
        %v784 = vsel %vm268, %v765, 0
        %v786 = vsel %vm268, %v766, 0
        %788 = vmatprep.subr.mxu0 %v759
        %789 = vmatpush1.msra.mxu0 %v758
        %790 = vmatprep.subr.mxu0 %v762
        %791 = vmatpush1.msra.mxu0 %v761
        %792 = vmatprep.subr.mxu0 %v784
        %793 = vmatpush1.msra.mxu0 %v782
        %794 = vmatprep.subr.mxu0 0.0
        %795 = vmatpush1.msra.mxu0 0.0
        %796 = vmatprep.subr.mxu0 0.0
        %797 = vmatpush1.msra.mxu0 0.0
        %798 = vmatprep.subr.mxu0 0.0
        %799 = vmatpush1.msra.mxu0 0.0
        %800 = vmatprep.subr.mxu0 0.0
        %801 = vmatpush1.msra.mxu0 0.0
        %802 = vmatprep.subr.mxu0 0.0
        %803 = vmatpush1.msra.mxu0 0.0
        %804 = vmatprep.subr.mxu0 0.0
        %805 = vmatpush1.msra.mxu0 0.0
        %806 = vmatprep.subr.mxu0 0.0
        %807 = vmatpush1.msra.mxu0 0.0
        %808 = vmatprep.subr.mxu0 0.0
        %809 = vmatpush1.msra.mxu0 0.0
        %810 = vmatprep.subr.mxu0 0.0
        %811 = vmatpush1.msra.mxu0 0.0
        %812 = vmatprep.subr.mxu0 0.0
        %813 = vmatpush1.msra.mxu0 0.0
        %814 = vmatprep.subr.mxu0 0.0
        %815 = vmatpush1.msra.mxu0 0.0
        %816 = vmatprep.subr.mxu0 0.0
        %817 = vmatpush1.msra.mxu0 0.0
        %818 = vmatprep.subr.mxu0 0.0
        %819 = vmatpush1.msra.mxu0 0.0
        %820 = vmatprep.subr.mxu0 0.0
        %821 = vmatpush1.msra.mxu0 0.0
        %822 = vmatprep.subr.mxu0 0.0
        %823 = vmatpush1.msra.mxu0 0.0
        %824 = vmatprep.subr.mxu0 0.0
        %825 = vmatpush1.msra.mxu0 0.0
        %826 = vmatprep.subr.mxu0 0.0
        %827 = vmatpush1.msra.mxu0 0.0
        %828 = vmatprep.subr.mxu0 0.0
        %829 = vmatpush1.msra.mxu0 0.0
        %830 = vmatprep.subr.mxu0 0.0
        %831 = vmatpush1.msra.mxu0 0.0
        %832 = vmatprep.subr.mxu0 0.0
        %833 = vmatpush1.msra.mxu0 0.0
        %834 = vmatprep.subr.mxu0 0.0
        %835 = vmatpush1.msra.mxu0 0.0
        %836 = vmatprep.subr.mxu0 0.0
        %837 = vmatpush1.msra.mxu0 0.0
        %838 = vmatprep.subr.mxu0 0.0
        %839 = vmatpush1.msra.mxu0 0.0
        %840 = vmatprep.subr.mxu0 0.0
        %841 = vmatpush1.msra.mxu0 0.0
        %842 = vmatprep.subr.mxu0 0.0
        %843 = vmatpush1.msra.mxu0 0.0
        %844 = vmatprep.subr.mxu0 0.0
        %845 = vmatpush1.msra.mxu0 0.0
        %846 = vmatprep.subr.mxu0 0.0
        %847 = vmatpush1.msra.mxu0 0.0
        %848 = vmatprep.subr.mxu0 0.0
        %849 = vmatpush1.msra.mxu0 0.0
        %850 = vmatprep.subr.mxu0 0.0
        %851 = vmatpush1.msra.mxu0 0.0
        %852 = vmatprep.mubr.f32.mxu0 0.0
        %853 = vmatmul.mubr.f32.gmra.mrb[0].mxu0 %v774
        %v854 = vpop.f32.mrb[0].mxu0
        %v855 = vadd.f32 0.0, %v854
        %v856 = vpop.f32.mrb[0].mxu0
        %v857 = vadd.f32 0.0, %v856
        %858 = vmatprep.mubr.f32.mxu0 0.0
        %859 = vmatmul.mubr.f32.gmra.mrb[0].mxu0 %v777
        %v860 = vpop.f32.mrb[0].mxu0
        %v861 = vadd.f32 0.0, %v860
        %v862 = vpop.f32.mrb[0].mxu0
        %v863 = vadd.f32 0.0, %v862
        %864 = vmatprep.mubr.f32.mxu0 0.0
        %865 = vmatmul.mubr.f32.gmra.mrb[0].mxu0 %v780
        %v866 = vpop.f32.mrb[0].mxu0
        %v867 = vadd.f32 0.0, %v866
        %v868 = vpop.f32.mrb[0].mxu0
        %v869 = vadd.f32 0.0, %v868
        %870 = vdwg.mxu0
        %871 = vmatprep.subr.mxu0 0.0
        %872 = vmatpush1.msra.mxu0 %v760
        %873 = vmatprep.subr.mxu0 0.0
        %874 = vmatpush1.msra.mxu0 %v763
        %875 = vmatprep.subr.mxu0 0.0
        %876 = vmatpush1.msra.mxu0 %v786
        %877 = vmatprep.subr.mxu0 0.0
        %878 = vmatpush1.msra.mxu0 0.0
        %879 = vmatprep.subr.mxu0 0.0
        %880 = vmatpush1.msra.mxu0 0.0
        %881 = vmatprep.subr.mxu0 0.0
        %882 = vmatpush1.msra.mxu0 0.0
        %883 = vmatprep.subr.mxu0 0.0
        %884 = vmatpush1.msra.mxu0 0.0
        %885 = vmatprep.subr.mxu0 0.0
        %886 = vmatpush1.msra.mxu0 0.0
        %887 = vmatprep.subr.mxu0 0.0
        %888 = vmatpush1.msra.mxu0 0.0
        %889 = vmatprep.subr.mxu0 0.0
        %890 = vmatpush1.msra.mxu0 0.0
        %891 = vmatprep.subr.mxu0 0.0
        %892 = vmatpush1.msra.mxu0 0.0
        %893 = vmatprep.subr.mxu0 0.0
        %894 = vmatpush1.msra.mxu0 0.0
        %895 = vmatprep.subr.mxu0 0.0
        %896 = vmatpush1.msra.mxu0 0.0
        %897 = vmatprep.subr.mxu0 0.0
        %898 = vmatpush1.msra.mxu0 0.0
        %899 = vmatprep.subr.mxu0 0.0
        %900 = vmatpush1.msra.mxu0 0.0
        %901 = vmatprep.subr.mxu0 0.0
        %902 = vmatpush1.msra.mxu0 0.0
        %903 = vmatprep.subr.mxu0 0.0
        %904 = vmatpush1.msra.mxu0 0.0
        %905 = vmatprep.subr.mxu0 0.0
        %906 = vmatpush1.msra.mxu0 0.0
        %907 = vmatprep.subr.mxu0 0.0
        %908 = vmatpush1.msra.mxu0 0.0
        %909 = vmatprep.subr.mxu0 0.0
        %910 = vmatpush1.msra.mxu0 0.0
        %911 = vmatprep.subr.mxu0 0.0
        %912 = vmatpush1.msra.mxu0 0.0
        %913 = vmatprep.subr.mxu0 0.0
        %914 = vmatpush1.msra.mxu0 0.0
        %915 = vmatprep.subr.mxu0 0.0
        %916 = vmatpush1.msra.mxu0 0.0
        %917 = vmatprep.subr.mxu0 0.0
        %918 = vmatpush1.msra.mxu0 0.0
        %919 = vmatprep.subr.mxu0 0.0
        %920 = vmatpush1.msra.mxu0 0.0
        %921 = vmatprep.subr.mxu0 0.0
        %922 = vmatpush1.msra.mxu0 0.0
        %923 = vmatprep.subr.mxu0 0.0
        %924 = vmatpush1.msra.mxu0 0.0
        %925 = vmatprep.subr.mxu0 0.0
        %926 = vmatpush1.msra.mxu0 0.0
        %927 = vmatprep.subr.mxu0 0.0
        %928 = vmatpush1.msra.mxu0 0.0
        %929 = vmatprep.subr.mxu0 0.0
        %930 = vmatpush1.msra.mxu0 0.0
        %931 = vmatprep.subr.mxu0 0.0
        %932 = vmatpush1.msra.mxu0 0.0
        %933 = vmatprep.subr.mxu0 0.0
        %934 = vmatpush1.msra.mxu0 0.0
        %935 = vmatprep.mubr.f32.mxu0 0.0
        %936 = vmatmul.mubr.f32.gmra.mrb[0].mxu0 %v774
        %v937 = vpop.f32.mrb[0].mxu0
        %v938 = vadd.f32 0.0, %v937
        %v939 = vpop.f32.mrb[0].mxu0
        %940 = vmatprep.mubr.f32.mxu0 0.0
        %941 = vmatmul.mubr.f32.gmra.mrb[0].mxu0 %v777
        %v942 = vpop.f32.mrb[0].mxu0
        %v943 = vadd.f32 0.0, %v942
        %v944 = vpop.f32.mrb[0].mxu0
        %945 = vmatprep.mubr.f32.mxu0 0.0
        %946 = vmatmul.mubr.f32.gmra.mrb[0].mxu0 %v780
        %v947 = vpop.f32.mrb[0].mxu0
        %v948 = vadd.f32 0.0, %v947
        %v949 = vpop.f32.mrb[0].mxu0
        %950 = vdwg.mxu0
        %v951 = vld [vmem:[#allocation2] sm:$0xff]
        %v952 = vld [vmem:[#allocation2 + $0x8] sm:$0xff]
        %v953 = vld [vmem:[#allocation2 + $0x10] sm:$0xff]
        %v954 = vld [vmem:[#allocation2 + $0x18] sm:$0xff]
        %v955 = vld [vmem:[#allocation2 + $0x20] sm:$0xff]
        %v956 = vld [vmem:[#allocation2 + $0x28] sm:$0xff]
        %v957 = vld [vmem:[#allocation2 + $0x30] sm:$0xff]
        %v958 = vld [vmem:[#allocation2 + $0x38] sm:$0xff]
        %v959 = vld [vmem:[#allocation2 + $0x40] sm:$0xff]
        %v960 = vadd.f32 %v951, %v855
        %v961 = vadd.f32 %v952, %v857
        %v962 = vadd.f32 %v953, %v938
        %v963 = vadd.f32 %v954, %v861
        %v964 = vadd.f32 %v955, %v863
        %v965 = vadd.f32 %v956, %v943
        %v966 = vadd.f32 %v957, %v867
        %v967 = vadd.f32 %v958, %v869
        %v968 = vadd.f32 %v959, %v948
        %969 = vst [vmem:[#allocation2] sm:$0xff] %v960
        %970 = vst [vmem:[#allocation2 + $0x8] sm:$0xff] %v961
        %971 = vst [vmem:[#allocation2 + $0x10] sm:$0xff] %v962
        %972 = vst [vmem:[#allocation2 + $0x18] sm:$0xff] %v963
        %973 = vst [vmem:[#allocation2 + $0x20] sm:$0xff] %v964
        %974 = vst [vmem:[#allocation2 + $0x28] sm:$0xff] %v965
        %975 = vst [vmem:[#allocation2 + $0x30] sm:$0xff] %v966
        %976 = vst [vmem:[#allocation2 + $0x38] sm:$0xff] %v967
        %977 = vst [vmem:[#allocation2 + $0x40] sm:$0xff] %v968
        %s978 = scalar_lea.vmem [#allocation6], 72
        %v979 = vld [vmem:[%s978] sm:$0xff]
        %v980 = vld [vmem:[%s978 + $0x8] sm:$0xff]
        %v981 = vld [vmem:[%s978 + $0x10] sm:$0xff]
        %982 = vrot.lane.b32.xlu0 %v269, 68
        %v983 = vpop.permute.xlu0 %982
        %984 = vrot.lane.b32.xlu0 %v270, 68
        %v985 = vpop.permute.xlu0 %984
        %986 = vrot.lane.b32.xlu0 %v271, 68
        %v987 = vpop.permute.xlu0 %986
        %988 = vrot.lane.b32.xlu0 %v470, 68
        %v989 = vpop.permute.xlu0 %988
        %990 = vrot.lane.b32.xlu0 %v272, 68
        %v991 = vpop.permute.xlu0 %990
        %992 = vrot.lane.b32.xlu0 %v273, 68
        %v993 = vpop.permute.xlu0 %992
        %994 = vrot.lane.b32.xlu0 %v274, 68
        %v995 = vpop.permute.xlu0 %994
        %996 = vrot.lane.b32.xlu0 %v471, 68
        %v997 = vpop.permute.xlu0 %996
        %998 = vrot.lane.b32.xlu0 %v265, 68
        %v999 = vpop.permute.xlu0 %998
        %1000 = vrot.lane.b32.xlu0 %v266, 68
        %v1001 = vpop.permute.xlu0 %1000
        %1002 = vrot.lane.b32.xlu0 %v267, 68
        %v1003 = vpop.permute.xlu0 %1002
        %1004 = vrot.lane.b32.xlu0 %v263, 68
        %v1005 = vpop.permute.xlu0 %1004
        %vm1006 = vcmask 556032
        %v1007 = vsel %vm1006, %v983, %v985
        %v1008 = vsel %vm1006, %v985, %v987
        %v1009 = vsel %vm1006, %v987, %v989
        %v1010 = vsel %vm1006, %v991, %v993
        %v1011 = vsel %vm1006, %v993, %v995
        %v1012 = vsel %vm1006, %v995, %v997
        %v1013 = vsel %vm1006, %v999, %v1001
        %v1014 = vsel %vm1006, %v1001, %v1003
        %v1015 = vsel %vm1006, %v1003, %v1005
        %v1023 = vsel %vm278, %v979, 0
        %v1026 = vsel %vm278, %v980, 0
        %v1029 = vsel %vm278, %v981, 0
        %v1031 = vsel %vm268, %v1013, 0
        %v1033 = vsel %vm268, %v1014, 0
        %v1035 = vsel %vm268, %v1015, 0
        %1037 = vmatprep.subr.mxu0 %v1008
        %1038 = vmatpush1.msra.mxu0 %v1007
        %1039 = vmatprep.subr.mxu0 %v1011
        %1040 = vmatpush1.msra.mxu0 %v1010
        %1041 = vmatprep.subr.mxu0 %v1033
        %1042 = vmatpush1.msra.mxu0 %v1031
        %1043 = vmatprep.subr.mxu0 0.0
        %1044 = vmatpush1.msra.mxu0 0.0
        %1045 = vmatprep.subr.mxu0 0.0
        %1046 = vmatpush1.msra.mxu0 0.0
        %1047 = vmatprep.subr.mxu0 0.0
        %1048 = vmatpush1.msra.mxu0 0.0
        %1049 = vmatprep.subr.mxu0 0.0
        %1050 = vmatpush1.msra.mxu0 0.0
        %1051 = vmatprep.subr.mxu0 0.0
        %1052 = vmatpush1.msra.mxu0 0.0
        %1053 = vmatprep.subr.mxu0 0.0
        %1054 = vmatpush1.msra.mxu0 0.0
        %1055 = vmatprep.subr.mxu0 0.0
        %1056 = vmatpush1.msra.mxu0 0.0
        %1057 = vmatprep.subr.mxu0 0.0
        %1058 = vmatpush1.msra.mxu0 0.0
        %1059 = vmatprep.subr.mxu0 0.0
        %1060 = vmatpush1.msra.mxu0 0.0
        %1061 = vmatprep.subr.mxu0 0.0
        %1062 = vmatpush1.msra.mxu0 0.0
        %1063 = vmatprep.subr.mxu0 0.0
        %1064 = vmatpush1.msra.mxu0 0.0
        %1065 = vmatprep.subr.mxu0 0.0
        %1066 = vmatpush1.msra.mxu0 0.0
        %1067 = vmatprep.subr.mxu0 0.0
        %1068 = vmatpush1.msra.mxu0 0.0
        %1069 = vmatprep.subr.mxu0 0.0
        %1070 = vmatpush1.msra.mxu0 0.0
        %1071 = vmatprep.subr.mxu0 0.0
        %1072 = vmatpush1.msra.mxu0 0.0
        %1073 = vmatprep.subr.mxu0 0.0
        %1074 = vmatpush1.msra.mxu0 0.0
        %1075 = vmatprep.subr.mxu0 0.0
        %1076 = vmatpush1.msra.mxu0 0.0
        %1077 = vmatprep.subr.mxu0 0.0
        %1078 = vmatpush1.msra.mxu0 0.0
        %1079 = vmatprep.subr.mxu0 0.0
        %1080 = vmatpush1.msra.mxu0 0.0
        %1081 = vmatprep.subr.mxu0 0.0
        %1082 = vmatpush1.msra.mxu0 0.0
        %1083 = vmatprep.subr.mxu0 0.0
        %1084 = vmatpush1.msra.mxu0 0.0
        %1085 = vmatprep.subr.mxu0 0.0
        %1086 = vmatpush1.msra.mxu0 0.0
        %1087 = vmatprep.subr.mxu0 0.0
        %1088 = vmatpush1.msra.mxu0 0.0
        %1089 = vmatprep.subr.mxu0 0.0
        %1090 = vmatpush1.msra.mxu0 0.0
        %1091 = vmatprep.subr.mxu0 0.0
        %1092 = vmatpush1.msra.mxu0 0.0
        %1093 = vmatprep.subr.mxu0 0.0
        %1094 = vmatpush1.msra.mxu0 0.0
        %1095 = vmatprep.subr.mxu0 0.0
        %1096 = vmatpush1.msra.mxu0 0.0
        %1097 = vmatprep.subr.mxu0 0.0
        %1098 = vmatpush1.msra.mxu0 0.0
        %1099 = vmatprep.subr.mxu0 0.0
        %1100 = vmatpush1.msra.mxu0 0.0
        %1101 = vmatprep.mubr.f32.mxu0 0.0
        %1102 = vmatmul.mubr.f32.gmra.mrb[0].mxu0 %v1023
        %v1103 = vpop.f32.mrb[0].mxu0
        %v1104 = vadd.f32 0.0, %v1103
        %v1105 = vpop.f32.mrb[0].mxu0
        %v1106 = vadd.f32 0.0, %v1105
        %1107 = vmatprep.mubr.f32.mxu0 0.0
        %1108 = vmatmul.mubr.f32.gmra.mrb[0].mxu0 %v1026
        %v1109 = vpop.f32.mrb[0].mxu0
        %v1110 = vadd.f32 0.0, %v1109
        %v1111 = vpop.f32.mrb[0].mxu0
        %v1112 = vadd.f32 0.0, %v1111
        %1113 = vmatprep.mubr.f32.mxu0 0.0
        %1114 = vmatmul.mubr.f32.gmra.mrb[0].mxu0 %v1029
        %v1115 = vpop.f32.mrb[0].mxu0
        %v1116 = vadd.f32 0.0, %v1115
        %v1117 = vpop.f32.mrb[0].mxu0
        %v1118 = vadd.f32 0.0, %v1117
        %1119 = vdwg.mxu0
        %1120 = vmatprep.subr.mxu0 0.0
        %1121 = vmatpush1.msra.mxu0 %v1009
        %1122 = vmatprep.subr.mxu0 0.0
        %1123 = vmatpush1.msra.mxu0 %v1012
        %1124 = vmatprep.subr.mxu0 0.0
        %1125 = vmatpush1.msra.mxu0 %v1035
        %1126 = vmatprep.subr.mxu0 0.0
        %1127 = vmatpush1.msra.mxu0 0.0
        %1128 = vmatprep.subr.mxu0 0.0
        %1129 = vmatpush1.msra.mxu0 0.0
        %1130 = vmatprep.subr.mxu0 0.0
        %1131 = vmatpush1.msra.mxu0 0.0
        %1132 = vmatprep.subr.mxu0 0.0
        %1133 = vmatpush1.msra.mxu0 0.0
        %1134 = vmatprep.subr.mxu0 0.0
        %1135 = vmatpush1.msra.mxu0 0.0
        %1136 = vmatprep.subr.mxu0 0.0
        %1137 = vmatpush1.msra.mxu0 0.0
        %1138 = vmatprep.subr.mxu0 0.0
        %1139 = vmatpush1.msra.mxu0 0.0
        %1140 = vmatprep.subr.mxu0 0.0
        %1141 = vmatpush1.msra.mxu0 0.0
        %1142 = vmatprep.subr.mxu0 0.0
        %1143 = vmatpush1.msra.mxu0 0.0
        %1144 = vmatprep.subr.mxu0 0.0
        %1145 = vmatpush1.msra.mxu0 0.0
        %1146 = vmatprep.subr.mxu0 0.0
        %1147 = vmatpush1.msra.mxu0 0.0
        %1148 = vmatprep.subr.mxu0 0.0
        %1149 = vmatpush1.msra.mxu0 0.0
        %1150 = vmatprep.subr.mxu0 0.0
        %1151 = vmatpush1.msra.mxu0 0.0
        %1152 = vmatprep.subr.mxu0 0.0
        %1153 = vmatpush1.msra.mxu0 0.0
        %1154 = vmatprep.subr.mxu0 0.0
        %1155 = vmatpush1.msra.mxu0 0.0
        %1156 = vmatprep.subr.mxu0 0.0
        %1157 = vmatpush1.msra.mxu0 0.0
        %1158 = vmatprep.subr.mxu0 0.0
        %1159 = vmatpush1.msra.mxu0 0.0
        %1160 = vmatprep.subr.mxu0 0.0
        %1161 = vmatpush1.msra.mxu0 0.0
        %1162 = vmatprep.subr.mxu0 0.0
        %1163 = vmatpush1.msra.mxu0 0.0
        %1164 = vmatprep.subr.mxu0 0.0
        %1165 = vmatpush1.msra.mxu0 0.0
        %1166 = vmatprep.subr.mxu0 0.0
        %1167 = vmatpush1.msra.mxu0 0.0
        %1168 = vmatprep.subr.mxu0 0.0
        %1169 = vmatpush1.msra.mxu0 0.0
        %1170 = vmatprep.subr.mxu0 0.0
        %1171 = vmatpush1.msra.mxu0 0.0
        %1172 = vmatprep.subr.mxu0 0.0
        %1173 = vmatpush1.msra.mxu0 0.0
        %1174 = vmatprep.subr.mxu0 0.0
        %1175 = vmatpush1.msra.mxu0 0.0
        %1176 = vmatprep.subr.mxu0 0.0
        %1177 = vmatpush1.msra.mxu0 0.0
        %1178 = vmatprep.subr.mxu0 0.0
        %1179 = vmatpush1.msra.mxu0 0.0
        %1180 = vmatprep.subr.mxu0 0.0
        %1181 = vmatpush1.msra.mxu0 0.0
        %1182 = vmatprep.subr.mxu0 0.0
        %1183 = vmatpush1.msra.mxu0 0.0
        %1184 = vmatprep.mubr.f32.mxu0 0.0
        %1185 = vmatmul.mubr.f32.gmra.mrb[0].mxu0 %v1023
        %v1186 = vpop.f32.mrb[0].mxu0
        %v1187 = vadd.f32 0.0, %v1186
        %v1188 = vpop.f32.mrb[0].mxu0
        %1189 = vmatprep.mubr.f32.mxu0 0.0
        %1190 = vmatmul.mubr.f32.gmra.mrb[0].mxu0 %v1026
        %v1191 = vpop.f32.mrb[0].mxu0
        %v1192 = vadd.f32 0.0, %v1191
        %v1193 = vpop.f32.mrb[0].mxu0
        %1194 = vmatprep.mubr.f32.mxu0 0.0
        %1195 = vmatmul.mubr.f32.gmra.mrb[0].mxu0 %v1029
        %v1196 = vpop.f32.mrb[0].mxu0
        %v1197 = vadd.f32 0.0, %v1196
        %v1198 = vpop.f32.mrb[0].mxu0
        %1199 = vdwg.mxu0
        %v1200 = vld [vmem:[#allocation2] sm:$0xff]
        %v1201 = vld [vmem:[#allocation2 + $0x8] sm:$0xff]
        %v1202 = vld [vmem:[#allocation2 + $0x10] sm:$0xff]
        %v1203 = vld [vmem:[#allocation2 + $0x18] sm:$0xff]
        %v1204 = vld [vmem:[#allocation2 + $0x20] sm:$0xff]
        %v1205 = vld [vmem:[#allocation2 + $0x28] sm:$0xff]
        %v1206 = vld [vmem:[#allocation2 + $0x30] sm:$0xff]
        %v1207 = vld [vmem:[#allocation2 + $0x38] sm:$0xff]
        %v1208 = vld [vmem:[#allocation2 + $0x40] sm:$0xff]
        %v1209 = vadd.f32 %v1200, %v1104
        %v1210 = vadd.f32 %v1201, %v1106
        %v1211 = vadd.f32 %v1202, %v1187
        %v1212 = vadd.f32 %v1203, %v1110
        %v1213 = vadd.f32 %v1204, %v1112
        %v1214 = vadd.f32 %v1205, %v1192
        %v1215 = vadd.f32 %v1206, %v1116
        %v1216 = vadd.f32 %v1207, %v1118
        %v1217 = vadd.f32 %v1208, %v1197
        %1218 = vst [vmem:[#allocation2] sm:$0xff] %v1209
        %1219 = vst [vmem:[#allocation2 + $0x8] sm:$0xff] %v1210
        %1220 = vst [vmem:[#allocation2 + $0x10] sm:$0xff] %v1211
        %1221 = vst [vmem:[#allocation2 + $0x18] sm:$0xff] %v1212
        %1222 = vst [vmem:[#allocation2 + $0x20] sm:$0xff] %v1213
        %1223 = vst [vmem:[#allocation2 + $0x28] sm:$0xff] %v1214
        %1224 = vst [vmem:[#allocation2 + $0x30] sm:$0xff] %v1215
        %1225 = vst [vmem:[#allocation2 + $0x38] sm:$0xff] %v1216
        %1226 = vst [vmem:[#allocation2 + $0x40] sm:$0xff] %v1217
        %s1227 = scalar_lea.vmem [#allocation6], 96
        %v1228 = vld [vmem:[%s1227] sm:$0xff]
        %v1229 = vld [vmem:[%s1227 + $0x8] sm:$0xff]
        %v1230 = vld [vmem:[%s1227 + $0x10] sm:$0xff]
        %1231 = vrot.lane.b32.xlu0 %v269, 48
        %v1232 = vpop.permute.xlu0 %1231
        %1233 = vrot.lane.b32.xlu0 %v270, 48
        %v1234 = vpop.permute.xlu0 %1233
        %1235 = vrot.lane.b32.xlu0 %v271, 48
        %v1236 = vpop.permute.xlu0 %1235
        %1237 = vrot.lane.b32.xlu0 %v470, 48
        %v1238 = vpop.permute.xlu0 %1237
        %1239 = vrot.lane.b32.xlu0 %v272, 48
        %v1240 = vpop.permute.xlu0 %1239
        %1241 = vrot.lane.b32.xlu0 %v273, 48
        %v1242 = vpop.permute.xlu0 %1241
        %1243 = vrot.lane.b32.xlu0 %v274, 48
        %v1244 = vpop.permute.xlu0 %1243
        %1245 = vrot.lane.b32.xlu0 %v471, 48
        %v1246 = vpop.permute.xlu0 %1245
        %1247 = vrot.lane.b32.xlu0 %v265, 48
        %v1248 = vpop.permute.xlu0 %1247
        %1249 = vrot.lane.b32.xlu0 %v266, 48
        %v1250 = vpop.permute.xlu0 %1249
        %1251 = vrot.lane.b32.xlu0 %v267, 48
        %v1252 = vpop.permute.xlu0 %1251
        %1253 = vrot.lane.b32.xlu0 %v263, 48
        %v1254 = vpop.permute.xlu0 %1253
        %vm1255 = vcmask 392192
        %v1256 = vsel %vm1255, %v1232, %v1234
        %v1257 = vsel %vm1255, %v1234, %v1236
        %v1258 = vsel %vm1255, %v1236, %v1238
        %v1259 = vsel %vm1255, %v1240, %v1242
        %v1260 = vsel %vm1255, %v1242, %v1244
        %v1261 = vsel %vm1255, %v1244, %v1246
        %v1262 = vsel %vm1255, %v1248, %v1250
        %v1263 = vsel %vm1255, %v1250, %v1252
        %v1264 = vsel %vm1255, %v1252, %v1254
        %v1272 = vsel %vm278, %v1228, 0
        %v1275 = vsel %vm278, %v1229, 0
        %v1278 = vsel %vm278, %v1230, 0
        %v1280 = vsel %vm268, %v1262, 0
        %v1282 = vsel %vm268, %v1263, 0
        %v1284 = vsel %vm268, %v1264, 0
        %1286 = vmatprep.subr.mxu0 %v1257
        %1287 = vmatpush1.msra.mxu0 %v1256
        %1288 = vmatprep.subr.mxu0 %v1260
        %1289 = vmatpush1.msra.mxu0 %v1259
        %1290 = vmatprep.subr.mxu0 %v1282
        %1291 = vmatpush1.msra.mxu0 %v1280
        %1292 = vmatprep.subr.mxu0 0.0
        %1293 = vmatpush1.msra.mxu0 0.0
        %1294 = vmatprep.subr.mxu0 0.0
        %1295 = vmatpush1.msra.mxu0 0.0
        %1296 = vmatprep.subr.mxu0 0.0
        %1297 = vmatpush1.msra.mxu0 0.0
        %1298 = vmatprep.subr.mxu0 0.0
        %1299 = vmatpush1.msra.mxu0 0.0
        %1300 = vmatprep.subr.mxu0 0.0
        %1301 = vmatpush1.msra.mxu0 0.0
        %1302 = vmatprep.subr.mxu0 0.0
        %1303 = vmatpush1.msra.mxu0 0.0
        %1304 = vmatprep.subr.mxu0 0.0
        %1305 = vmatpush1.msra.mxu0 0.0
        %1306 = vmatprep.subr.mxu0 0.0
        %1307 = vmatpush1.msra.mxu0 0.0
        %1308 = vmatprep.subr.mxu0 0.0
        %1309 = vmatpush1.msra.mxu0 0.0
        %1310 = vmatprep.subr.mxu0 0.0
        %1311 = vmatpush1.msra.mxu0 0.0
        %1312 = vmatprep.subr.mxu0 0.0
        %1313 = vmatpush1.msra.mxu0 0.0
        %1314 = vmatprep.subr.mxu0 0.0
        %1315 = vmatpush1.msra.mxu0 0.0
        %1316 = vmatprep.subr.mxu0 0.0
        %1317 = vmatpush1.msra.mxu0 0.0
        %1318 = vmatprep.subr.mxu0 0.0
        %1319 = vmatpush1.msra.mxu0 0.0
        %1320 = vmatprep.subr.mxu0 0.0
        %1321 = vmatpush1.msra.mxu0 0.0
        %1322 = vmatprep.subr.mxu0 0.0
        %1323 = vmatpush1.msra.mxu0 0.0
        %1324 = vmatprep.subr.mxu0 0.0
        %1325 = vmatpush1.msra.mxu0 0.0
        %1326 = vmatprep.subr.mxu0 0.0
        %1327 = vmatpush1.msra.mxu0 0.0
        %1328 = vmatprep.subr.mxu0 0.0
        %1329 = vmatpush1.msra.mxu0 0.0
        %1330 = vmatprep.subr.mxu0 0.0
        %1331 = vmatpush1.msra.mxu0 0.0
        %1332 = vmatprep.subr.mxu0 0.0
        %1333 = vmatpush1.msra.mxu0 0.0
        %1334 = vmatprep.subr.mxu0 0.0
        %1335 = vmatpush1.msra.mxu0 0.0
        %1336 = vmatprep.subr.mxu0 0.0
        %1337 = vmatpush1.msra.mxu0 0.0
        %1338 = vmatprep.subr.mxu0 0.0
        %1339 = vmatpush1.msra.mxu0 0.0
        %1340 = vmatprep.subr.mxu0 0.0
        %1341 = vmatpush1.msra.mxu0 0.0
        %1342 = vmatprep.subr.mxu0 0.0
        %1343 = vmatpush1.msra.mxu0 0.0
        %1344 = vmatprep.subr.mxu0 0.0
        %1345 = vmatpush1.msra.mxu0 0.0
        %1346 = vmatprep.subr.mxu0 0.0
        %1347 = vmatpush1.msra.mxu0 0.0
        %1348 = vmatprep.subr.mxu0 0.0
        %1349 = vmatpush1.msra.mxu0 0.0
        %1350 = vmatprep.mubr.f32.mxu0 0.0
        %1351 = vmatmul.mubr.f32.gmra.mrb[0].mxu0 %v1272
        %v1352 = vpop.f32.mrb[0].mxu0
        %v1353 = vadd.f32 0.0, %v1352
        %v1354 = vpop.f32.mrb[0].mxu0
        %v1355 = vadd.f32 0.0, %v1354
        %1356 = vmatprep.mubr.f32.mxu0 0.0
        %1357 = vmatmul.mubr.f32.gmra.mrb[0].mxu0 %v1275
        %v1358 = vpop.f32.mrb[0].mxu0
        %v1359 = vadd.f32 0.0, %v1358
        %v1360 = vpop.f32.mrb[0].mxu0
        %v1361 = vadd.f32 0.0, %v1360
        %1362 = vmatprep.mubr.f32.mxu0 0.0
        %1363 = vmatmul.mubr.f32.gmra.mrb[0].mxu0 %v1278
        %v1364 = vpop.f32.mrb[0].mxu0
        %v1365 = vadd.f32 0.0, %v1364
        %v1366 = vpop.f32.mrb[0].mxu0
        %v1367 = vadd.f32 0.0, %v1366
        %1368 = vdwg.mxu0
        %1369 = vmatprep.subr.mxu0 0.0
        %1370 = vmatpush1.msra.mxu0 %v1258
        %1371 = vmatprep.subr.mxu0 0.0
        %1372 = vmatpush1.msra.mxu0 %v1261
        %1373 = vmatprep.subr.mxu0 0.0
        %1374 = vmatpush1.msra.mxu0 %v1284
        %1375 = vmatprep.subr.mxu0 0.0
        %1376 = vmatpush1.msra.mxu0 0.0
        %1377 = vmatprep.subr.mxu0 0.0
        %1378 = vmatpush1.msra.mxu0 0.0
        %1379 = vmatprep.subr.mxu0 0.0
        %1380 = vmatpush1.msra.mxu0 0.0
        %1381 = vmatprep.subr.mxu0 0.0
        %1382 = vmatpush1.msra.mxu0 0.0
        %1383 = vmatprep.subr.mxu0 0.0
        %1384 = vmatpush1.msra.mxu0 0.0
        %1385 = vmatprep.subr.mxu0 0.0
        %1386 = vmatpush1.msra.mxu0 0.0
        %1387 = vmatprep.subr.mxu0 0.0
        %1388 = vmatpush1.msra.mxu0 0.0
        %1389 = vmatprep.subr.mxu0 0.0
        %1390 = vmatpush1.msra.mxu0 0.0
        %1391 = vmatprep.subr.mxu0 0.0
        %1392 = vmatpush1.msra.mxu0 0.0
        %1393 = vmatprep.subr.mxu0 0.0
        %1394 = vmatpush1.msra.mxu0 0.0
        %1395 = vmatprep.subr.mxu0 0.0
        %1396 = vmatpush1.msra.mxu0 0.0
        %1397 = vmatprep.subr.mxu0 0.0
        %1398 = vmatpush1.msra.mxu0 0.0
        %1399 = vmatprep.subr.mxu0 0.0
        %1400 = vmatpush1.msra.mxu0 0.0
        %1401 = vmatprep.subr.mxu0 0.0
        %1402 = vmatpush1.msra.mxu0 0.0
        %1403 = vmatprep.subr.mxu0 0.0
        %1404 = vmatpush1.msra.mxu0 0.0
        %1405 = vmatprep.subr.mxu0 0.0
        %1406 = vmatpush1.msra.mxu0 0.0
        %1407 = vmatprep.subr.mxu0 0.0
        %1408 = vmatpush1.msra.mxu0 0.0
        %1409 = vmatprep.subr.mxu0 0.0
        %1410 = vmatpush1.msra.mxu0 0.0
        %1411 = vmatprep.subr.mxu0 0.0
        %1412 = vmatpush1.msra.mxu0 0.0
        %1413 = vmatprep.subr.mxu0 0.0
        %1414 = vmatpush1.msra.mxu0 0.0
        %1415 = vmatprep.subr.mxu0 0.0
        %1416 = vmatpush1.msra.mxu0 0.0
        %1417 = vmatprep.subr.mxu0 0.0
        %1418 = vmatpush1.msra.mxu0 0.0
        %1419 = vmatprep.subr.mxu0 0.0
        %1420 = vmatpush1.msra.mxu0 0.0
        %1421 = vmatprep.subr.mxu0 0.0
        %1422 = vmatpush1.msra.mxu0 0.0
        %1423 = vmatprep.subr.mxu0 0.0
        %1424 = vmatpush1.msra.mxu0 0.0
        %1425 = vmatprep.subr.mxu0 0.0
        %1426 = vmatpush1.msra.mxu0 0.0
        %1427 = vmatprep.subr.mxu0 0.0
        %1428 = vmatpush1.msra.mxu0 0.0
        %1429 = vmatprep.subr.mxu0 0.0
        %1430 = vmatpush1.msra.mxu0 0.0
        %1431 = vmatprep.subr.mxu0 0.0
        %1432 = vmatpush1.msra.mxu0 0.0
        %1433 = vmatprep.mubr.f32.mxu0 0.0
        %1434 = vmatmul.mubr.f32.gmra.mrb[0].mxu0 %v1272
        %v1435 = vpop.f32.mrb[0].mxu0
        %v1436 = vadd.f32 0.0, %v1435
        %v1437 = vpop.f32.mrb[0].mxu0
        %1438 = vmatprep.mubr.f32.mxu0 0.0
        %1439 = vmatmul.mubr.f32.gmra.mrb[0].mxu0 %v1275
        %v1440 = vpop.f32.mrb[0].mxu0
        %v1441 = vadd.f32 0.0, %v1440
        %v1442 = vpop.f32.mrb[0].mxu0
        %1443 = vmatprep.mubr.f32.mxu0 0.0
        %1444 = vmatmul.mubr.f32.gmra.mrb[0].mxu0 %v1278
        %v1445 = vpop.f32.mrb[0].mxu0
        %v1446 = vadd.f32 0.0, %v1445
        %v1447 = vpop.f32.mrb[0].mxu0
        %1448 = vdwg.mxu0
        %v1449 = vld [vmem:[#allocation2] sm:$0xff]
        %v1450 = vld [vmem:[#allocation2 + $0x8] sm:$0xff]
        %v1451 = vld [vmem:[#allocation2 + $0x10] sm:$0xff]
        %v1452 = vld [vmem:[#allocation2 + $0x18] sm:$0xff]
        %v1453 = vld [vmem:[#allocation2 + $0x20] sm:$0xff]
        %v1454 = vld [vmem:[#allocation2 + $0x28] sm:$0xff]
        %v1455 = vld [vmem:[#allocation2 + $0x30] sm:$0xff]
        %v1456 = vld [vmem:[#allocation2 + $0x38] sm:$0xff]
        %v1457 = vld [vmem:[#allocation2 + $0x40] sm:$0xff]
        %v1458 = vadd.f32 %v1449, %v1353
        %v1459 = vadd.f32 %v1450, %v1355
        %v1460 = vadd.f32 %v1451, %v1436
        %v1461 = vadd.f32 %v1452, %v1359
        %v1462 = vadd.f32 %v1453, %v1361
        %v1463 = vadd.f32 %v1454, %v1441
        %v1464 = vadd.f32 %v1455, %v1365
        %v1465 = vadd.f32 %v1456, %v1367
        %v1466 = vadd.f32 %v1457, %v1446
        %1467 = vst [vmem:[#allocation2] sm:$0xff] %v1458
        %1468 = vst [vmem:[#allocation2 + $0x8] sm:$0xff] %v1459
        %1469 = vst [vmem:[#allocation2 + $0x10] sm:$0xff] %v1460
        %1470 = vst [vmem:[#allocation2 + $0x18] sm:$0xff] %v1461
        %1471 = vst [vmem:[#allocation2 + $0x20] sm:$0xff] %v1462
        %1472 = vst [vmem:[#allocation2 + $0x28] sm:$0xff] %v1463
        %1473 = vst [vmem:[#allocation2 + $0x30] sm:$0xff] %v1464
        %1474 = vst [vmem:[#allocation2 + $0x38] sm:$0xff] %v1465
        %1475 = vst [vmem:[#allocation2 + $0x40] sm:$0xff] %v1466
        %v1476 = vld [vmem:[#allocation2] sm:$0xff]
        %v1477 = vld [vmem:[#allocation2 + $0x8] sm:$0xff]
        %v1478 = vld [vmem:[#allocation2 + $0x10] sm:$0xff]
        %v1479 = vld [vmem:[#allocation2 + $0x18] sm:$0xff]
        %v1480 = vld [vmem:[#allocation2 + $0x20] sm:$0xff]
        %v1481 = vld [vmem:[#allocation2 + $0x28] sm:$0xff]
        %v1482 = vld [vmem:[#allocation2 + $0x30] sm:$0xff]
        %v1483 = vld [vmem:[#allocation2 + $0x38] sm:$0xff]
        %v1484 = vld [vmem:[#allocation2 + $0x40] sm:$0xff]
        %v1485 = vld [vmem:[%s2] sm:$0xff]
        %v1486 = vld [vmem:[%s2 + $0x8] sm:$0xff]
        %v1487 = vld [vmem:[%s2 + $0x10] sm:$0xff]
        %1489 = vset.pattern.permute.xlu0 0
        %1490 = vperm.xlu0 %1489, %v1485
        %v1491 = vpop.permute.xlu0 %1490
        %1494 = vset.pattern.permute.xlu0 0
        %1495 = vperm.xlu0 %1494, %v1486
        %v1496 = vpop.permute.xlu0 %1495
        %1499 = vset.pattern.permute.xlu0 0
        %1500 = vperm.xlu0 %1499, %v1487
        %v1501 = vpop.permute.xlu0 %1500
        %v1503 = vadd.f32 %v1476, %v1491
        %v1504 = vadd.f32 %v1477, %v1491
        %v1505 = vadd.f32 %v1478, %v1491
        %v1506 = vadd.f32 %v1479, %v1496
        %v1507 = vadd.f32 %v1480, %v1496
        %v1508 = vadd.f32 %v1481, %v1496
        %v1509 = vadd.f32 %v1482, %v1501
        %v1510 = vadd.f32 %v1483, %v1501
        %v1511 = vadd.f32 %v1484, %v1501
        %v1512 = vmax.f32 %v1503, 0.0
        %v1513 = vmax.f32 %v1504, 0.0
        %v1514 = vmax.f32 %v1505, 0.0
        %v1515 = vmax.f32 %v1506, 0.0
        %v1516 = vmax.f32 %v1507, 0.0
        %v1517 = vmax.f32 %v1508, 0.0
        %v1518 = vmax.f32 %v1509, 0.0
        %v1519 = vmax.f32 %v1510, 0.0
        %v1520 = vmax.f32 %v1511, 0.0
        %v1521 = vadd.f32 %v1512, %v1515
        %v1522 = vadd.f32 %v1513, %v1516
        %v1523 = vadd.f32 %v1514, %v1517
        %v1524 = vadd.f32 %v1521, %v1518
        %v1525 = vadd.f32 %v1522, %v1519
        %v1526 = vadd.f32 %v1523, %v1520
        %1527 = vst [vmem:[%s201] sm:$0xff] %v1524
        %1528 = vst [vmem:[%s201 + $0x8] sm:$0xff] %v1525
        %1529 = vst [vmem:[%s201 + $0x10] sm:$0xff] %v1526
        %s1530 = sand.u32 %s97, 1
        %s1531 = scalar_lea.sflag [#allocation5], %s1530
        %s1532 = sand.u32 %s97, 1
        %s1533 = smul.addr %s1532, 24
        %s1534 = scalar_lea.vmem [#allocation8], %s1533
        // Predicated region
        $region41: #{tpu_custom_call.1} parent=31 // pred_check
          %p1535 = pneg %p107
        $region42: #{tpu_custom_call.1} parent=31 // pred_check_branch
          %1537 = sbr.rel (%p1535) target = $region44
        $region43: #{tpu_custom_call.1} parent=31 // pred_region
          %s1539 = ssub.s32 384, 384
          %1540 = vsyncadd %s1531, %s1539
          %s1541 = smul.addr %s21, 3
          %s1542 = smul.addr %s1541, 128
          %s1543 = scalar_lea.hbm %s3, %s1542
          %s1545 = sshll.u32 %s1534, 4
          %s1546 = int_to_ptr.vmem [resolvable:$true] %s1545
          %1548 = dma.vmem_to_hbm [thread:$0]  %s1546, 384, %s1543, %s1531
        $region44: #{tpu_custom_call.1} parent=31 // pred_fallthru
          _
      $region32: #{tpu_custom_call.1} parent=5 // pred_fallthru
        _
      %p1549 = scmp.le.s32.totalorder 2, %s16
      // Predicated region
      $region45: #{tpu_custom_call.1} parent=5 // pred_check
        %p1550 = pneg %p1549
      $region46: #{tpu_custom_call.1} parent=5 // pred_check_branch
        %1552 = sbr.rel (%p1550) target = $region48
      $region47: #{tpu_custom_call.1} parent=5 // pred_region
        %s1553 = ssub.s32 %s16, 2
        // Predicated region
        $region49: #{tpu_custom_call.1} parent=47 // pred_check
          %p1554 = pneg %p113
        $region50: #{tpu_custom_call.1} parent=47 // pred_check_branch
          %1556 = sbr.rel (%p1554) target = $region52
        $region51: #{tpu_custom_call.1} parent=47 // pred_region
          %s1557 = sand.u32 %s98, 1
          %s1558 = scalar_lea.sflag [#allocation5], %s1557
          %s1559 = sand.u32 %s98, 1
          %s1560 = smul.addr %s1559, 24
          %s1561 = scalar_lea.vmem [#allocation8], %s1560
          %1562 = dma.done %s1558, 384
        $region52: #{tpu_custom_call.1} parent=47 // pred_fallthru
          _
      $region48: #{tpu_custom_call.1} parent=5 // pred_fallthru
        _
    $region6: #{tpu_custom_call.1} parent=1 // loop_footer
      %s20 = sadd.s32 1, %s16
    $region7: #{tpu_custom_call.1} parent=1 // loop_footer_branch
      %15 = sbr.rel target = $region3
    $region8: #{tpu_custom_call.1} parent=1 // loop_exit
      _
    %1563 = vsyncpa [#allocation4], 1
    %s1564 = scalar_lea.sflag [#allocation4], 1
    %1565 = vsyncpa %s1564, 1
    %1566 = vsyncpa [#allocation7], 1
    %1567 = vsyncpa [#allocation5], 1
    %s1568 = scalar_lea.sflag [#allocation5], 1
    %1569 = vsyncpa %s1568, 1

</llo_original>
